<compile_context>
chip_gen: v5e
topology: v5e:2x2
jax: 0.10.0
libtpu: 0.0.40
codegen_flags: <defaults>
</compile_context>

<pallas_src>
import functools

import numpy as np
import jax
import jax.numpy as jnp
from jax import lax
from jax.experimental import pallas as pl
from jax.experimental.pallas import tpu as pltpu

EPS = 1e-5  # torch.nn.LayerNorm default eps


def _round_up(n, m):
    return (n + m - 1) // m * m


def _pick_samples_per_step(B, HW, max_lanes=2048):
    """Largest divisor of B such that Bt*HW stays lane-friendly and (if possible) grid >= 2
    so v7x's two TensorCores both get work."""
    divs = [d for d in range(1, B + 1) if B % d == 0 and d * HW <= max_lanes]
    pref = [d for d in divs if B // d >= 2]
    return max(pref) if pref else max(divs)


def _tap_masks(H, W, Bt):
    """(9, 1, Bt*H*W) f32 validity masks: 1 where the (ky,kx)-shifted source pixel is inside the
    image. Tiled per sample, so every cross-sample / zero-padding wrap from pltpu.roll is zeroed."""
    HW = H * W
    yy, xx = np.meshgrid(np.arange(H), np.arange(W), indexing="ij")
    yy = yy.reshape(-1)
    xx = xx.reshape(-1)
    m = np.zeros((9, 1, HW), np.float32)
    for ky in range(3):
        for kx in range(3):
            dy, dx = ky - 1, kx - 1
            valid = ((yy + dy >= 0) & (yy + dy < H) &
                     (xx + dx >= 0) & (xx + dx < W))
            m[ky * 3 + kx, 0, :] = valid.astype(np.float32)
    return jnp.asarray(np.tile(m, (1, 1, Bt)))


def _full_sum(a):
    # (C, HW) -> (1, 1); two axis-wise reductions (lane reduce then sublane reduce).
    return jnp.sum(jnp.sum(a, axis=1, keepdims=True), axis=0, keepdims=True)


def resconv_kernel(W, HW, Bt, Cout,
                   x_ref, mask_ref,
                   w1s_ref, b1s_ref, g1_ref, be1_ref,
                   w2_ref, b2_ref, g2_ref, be2_ref,
                   gs_ref, bes_ref,
                   out_ref):
    L = Bt * HW
    mxu_dtype = w1s_ref.dtype
    xv = x_ref[...]                                            # (Cin_p, L) f32, lane-dense

    def stack_taps(v):
        # 9 rolled+masked whole-image copies stacked along K -> one MXU matmul per conv.
        parts = []
        for ky in range(3):
            for kx in range(3):
                tap = ky * 3 + kx
                off = (ky - 1) * W + (kx - 1)                  # flat-index shift of this tap
                if off == 0:
                    parts.append(v)                            # centre tap: mask is all-ones
                else:
                    parts.append(pltpu.roll(v, shift=(-off) % L, axis=1) * mask_ref[tap])
        return jnp.concatenate(parts, axis=0).astype(mxu_dtype)

    def layer_norm(v, g_ref, b_ref):
        # Per-sample LayerNorm over ALL (C,H,W) elements; single-pass stats (sum, sum-of-squares).
        C = v.shape[0]
        g = g_ref[...]
        b = b_ref[...]
        inv_n = 1.0 / (C * HW)
        outs = []
        for s in range(Bt):                                    # Bt is small & static
            vs = v[:, s * HW:(s + 1) * HW]
            s1 = _full_sum(vs)
            s2 = _full_sum(vs * vs)
            mean = s1 * inv_n
            var = s2 * inv_n - mean * mean
            inv = lax.rsqrt(var + EPS)
            outs.append((vs - mean) * inv * g + b)
        return jnp.concatenate(outs, axis=1) if Bt > 1 else outs[0]

    # Conv1 (3x3) + fused 1x1 shortcut: ONE matmul (2*Cout, 9*Cin_p) @ (9*Cin_p, L).
    y = jnp.dot(w1s_ref[...], stack_taps(xv),
                preferred_element_type=jnp.float32) + b1s_ref[...]
    h = jnp.maximum(layer_norm(y[:Cout], g1_ref, be1_ref), 0.0)
    s = layer_norm(y[Cout:], gs_ref, bes_ref)

    # Conv2 (3x3): ONE matmul (Cout, 9*Cout) @ (9*Cout, L).
    h = jnp.dot(w2_ref[...], stack_taps(h),
                preferred_element_type=jnp.float32) + b2_ref[...]
    h = jnp.maximum(layer_norm(h, g2_ref, be2_ref), 0.0)

    # Residual add; dropout(rate=0.0) is identity.
    # TODO(synk): dropout_rate > 0.0 would need pltpu.prng_seed/prng_random_bits masking.
    out_ref[...] = (h + s).astype(out_ref.dtype)


def res_conv_block(x_nchw, params, *, H, W, mxu_dtype=jnp.bfloat16, samples_per_step=None):
    B, cin = x_nchw.shape[0], x_nchw.shape[1]
    cout = params["b1"].shape[0]
    HW = H * W
    cin_p = _round_up(cin, 8)                                  # full (8, .) sublane tiles

    Bt = samples_per_step if samples_per_step is not None else _pick_samples_per_step(B, HW)
    assert B % Bt == 0
    L = Bt * HW

    # (B, Cin, H, W) -> lane-dense (Cin_p, B*HW): channels padded, batch*spatial on the lane axis.
    x_f = x_nchw.reshape(B, cin, HW).astype(jnp.float32)
    x_f = jnp.pad(x_f, ((0, 0), (0, cin_p - cin), (0, 0)))
    x_flat = jnp.transpose(x_f, (1, 0, 2)).reshape(cin_p, B * HW)

    masks = _tap_masks(H, W, Bt)

    def taps_fused(w, cpad):
        # (Cout, Ci, 3, 3) -> (Cout, 9*cpad); K order = tap-major (ky*3+kx), channel-minor.
        co, ci = w.shape[0], w.shape[1]
        wt = jnp.transpose(w, (0, 2, 3, 1))                    # (Cout, 3, 3, Ci)
        wt = jnp.pad(wt, ((0, 0), (0, 0), (0, 0), (0, cpad - ci)))
        return wt.reshape(co, 9 * cpad)

    w1f = taps_fused(params["w1"], cin_p)                      # (Cout, 9*Cin_p)
    # Fuse the 1x1 shortcut: extra Cout rows that are zero except at the centre tap's Cin block.
    ws_pad = jnp.pad(params["ws"][:, :, 0, 0], ((0, 0), (0, cin_p - cin)))   # (Cout, Cin_p)
    ws_rows = jnp.zeros((cout, 9, cin_p), jnp.float32).at[:, 4, :].set(ws_pad)
    ws_rows = ws_rows.reshape(cout, 9 * cin_p)
    w1s = jnp.concatenate([w1f, ws_rows], axis=0).astype(mxu_dtype)          # (2*Cout, 9*Cin_p)
    b1s = jnp.concatenate([params["b1"], params["bs"]]).reshape(2 * cout, 1)

    w2f = taps_fused(params["w2"], cout).astype(mxu_dtype)     # (Cout, 9*Cout)
    b2 = params["b2"].reshape(cout, 1)

    flat = lambda g: g.reshape(g.shape[0], HW)
    g1, be1 = flat(params["g1"]), flat(params["be1"])
    g2, be2 = flat(params["g2"]), flat(params["be2"])
    gs, bes = flat(params["gs"]), flat(params["bes"])

    kernel = functools.partial(resconv_kernel, W, HW, Bt, cout)
    const = lambda shape: pl.BlockSpec(shape, lambda b, _s=shape: tuple(0 for _ in _s))

    grid = (B // Bt,)

    flops = int(2 * B * HW * (2 * cout * 9 * cin_p + cout * 9 * cout) + 12 * B * HW * cout)
    param_bytes = int(w1s.size * w1s.dtype.itemsize + w2f.size * w2f.dtype.itemsize
                      + (b1s.size + b2.size) * 4 + 6 * cout * HW * 4 + masks.size * 4)
    bytes_accessed = int(x_flat.size * 4 + cout * B * HW * 4 + param_bytes)

    # TODO(synk): when scaling C/H/W toward v7x's 64 MiB VMEM, mark the grid-invariant operand
    # BlockSpecs pipeline_mode=pl.Buffered(1), store LN affines in bf16 and set vmem_limit_bytes.
    out_flat = pl.pallas_call(
        kernel,
        out_shape=jax.ShapeDtypeStruct((cout, B * HW), jnp.float32),
        grid_spec=pltpu.PrefetchScalarGridSpec(
            num_scalar_prefetch=0,
            grid=grid,
            in_specs=[
                pl.BlockSpec((cin_p, L), lambda b: (0, b)),        # Bt samples per grid step
                const((9, 1, L)),                                  # per-tap validity masks
                const((2 * cout, 9 * cin_p)), const((2 * cout, 1)),  # fused conv1 + shortcut W, b
                const((cout, HW)), const((cout, HW)),              # LN1 gamma, beta
                const((cout, 9 * cout)), const((cout, 1)),         # fused conv2 W, b
                const((cout, HW)), const((cout, HW)),              # LN2 gamma, beta
                const((cout, HW)), const((cout, HW)),              # LN_shortcut gamma, beta
            ],
            out_specs=pl.BlockSpec((cout, L), lambda b: (0, b)),
        ),
        compiler_params=pltpu.CompilerParams(
            dimension_semantics=("parallel",)),                    # independent sample groups
        cost_estimate=pl.CostEstimate(flops=flops, transcendentals=3 * B,
                                      bytes_accessed=bytes_accessed),
    )(x_flat, masks, w1s, b1s, g1, be1, w2f, b2, g2, be2, gs, bes)

    return jnp.transpose(out_flat.reshape(cout, B, HW), (1, 0, 2)).reshape(B, cout, H, W)


def reference_nchw(x, p):
    """Pure-JAX reference matching PyTorch semantics (NCHW, f32)."""
    def conv(x, w, b, pad):
        y = lax.conv_general_dilated(x, w, (1, 1), [(pad, pad), (pad, pad)],
                                     dimension_numbers=("NCHW", "OIHW", "NCHW"))
        return y + b[None, :, None, None]

    def ln(x, g, b):
        m = jnp.mean(x, axis=(1, 2, 3), keepdims=True)
        v = jnp.mean((x - m) ** 2, axis=(1, 2, 3), keepdims=True)
        return (x - m) / jnp.sqrt(v + EPS) * g[None] + b[None]

    h = jax.nn.relu(ln(conv(x, p["w1"], p["b1"], 1), p["g1"], p["be1"]))
    h = jax.nn.relu(ln(conv(h, p["w2"], p["b2"], 1), p["g2"], p["be2"]))
    s = ln(conv(x, p["ws"], p["bs"], 0), p["gs"], p["bes"])
    return h + s  # dropout(0.0) = identity


if __name__ == "__main__":
    B, CIN, COUT, H, W = 4, 4, 8, 16, 16

    key = jax.random.PRNGKey(0)
    ks = jax.random.split(key, 13)
    # Deterministic synthetic parameters (shapes match nn.Conv2d / nn.LayerNorm in __init__).
    p = {
        "w1": 0.1 * jax.random.normal(ks[0], (COUT, CIN, 3, 3), jnp.float32),
        "b1": 0.1 * jax.random.normal(ks[1], (COUT,), jnp.float32),
        "g1": 1.0 + 0.1 * jax.random.normal(ks[2], (COUT, H, W), jnp.float32),
        "be1": 0.1 * jax.random.normal(ks[3], (COUT, H, W), jnp.float32),
        "w2": 0.1 * jax.random.normal(ks[4], (COUT, COUT, 3, 3), jnp.float32),
        "b2": 0.1 * jax.random.normal(ks[5], (COUT,), jnp.float32),
        "g2": 1.0 + 0.1 * jax.random.normal(ks[6], (COUT, H, W), jnp.float32),
        "be2": 0.1 * jax.random.normal(ks[7], (COUT, H, W), jnp.float32),
        "ws": 0.1 * jax.random.normal(ks[8], (COUT, CIN, 1, 1), jnp.float32),
        "bs": 0.1 * jax.random.normal(ks[9], (COUT,), jnp.float32),
        "gs": 1.0 + 0.1 * jax.random.normal(ks[10], (COUT, H, W), jnp.float32),
        "bes": 0.1 * jax.random.normal(ks[11], (COUT, H, W), jnp.float32),
    }
    x = jax.random.normal(ks[12], (B, CIN, H, W), jnp.float32)   # NCHW like PyTorch

    ref = reference_nchw(x, p)

    # Structural check in f32 MXU precision (tight tolerance): validates roll+mask halo,
    # fused tap/shortcut weights, batch folding and per-sample LayerNorm.
    out_f32 = jax.block_until_ready(res_conv_block(x, p, H=H, W=W, mxu_dtype=jnp.float32))
    err_f32 = float(jnp.max(jnp.abs(out_f32 - ref)))

    # Production path: bf16 MXU operands with f32 accumulation / f32 LayerNorm (looser tolerance).
    out_bf16 = jax.block_until_ready(res_conv_block(x, p, H=H, W=W, mxu_dtype=jnp.bfloat16))
    err_bf16 = float(jnp.max(jnp.abs(out_bf16 - ref)))

    if out_bf16.shape == (B, COUT, H, W) and err_f32 < 1e-3 and err_bf16 < 5e-2:
        print("KERNEL_OK")
    else:
        print(f"MISMATCH f32_err={err_f32} bf16_err={err_bf16}")
</pallas_src>

<mosaic_0001>
module attributes {stable_mosaic.version = 11 : i64} {
  func.func @resconv_kernel(%arg0: i32, %arg1: memref<8x512xf32, #tpu.memory_space<vmem>>, %arg2: memref<9x1x512xf32, #tpu.memory_space<vmem>>, %arg3: memref<16x72xf32, #tpu.memory_space<vmem>>, %arg4: memref<16x1xf32, #tpu.memory_space<vmem>>, %arg5: memref<8x256xf32, #tpu.memory_space<vmem>>, %arg6: memref<8x256xf32, #tpu.memory_space<vmem>>, %arg7: memref<8x72xf32, #tpu.memory_space<vmem>>, %arg8: memref<8x1xf32, #tpu.memory_space<vmem>>, %arg9: memref<8x256xf32, #tpu.memory_space<vmem>>, %arg10: memref<8x256xf32, #tpu.memory_space<vmem>>, %arg11: memref<8x256xf32, #tpu.memory_space<vmem>>, %arg12: memref<8x256xf32, #tpu.memory_space<vmem>>, %arg13: memref<8x512xf32, #tpu.memory_space<vmem>>) attributes {dimension_semantics = [#tpu.dimension_semantics<parallel>], iteration_bounds = array<i64: 2>, scalar_prefetch = 0 : i64, scratch_operands = 0 : i64, tpu.core_type = #tpu.core_type<tc>, window_params = [{transform_indices = @transform_0, window_bounds = array<i64: 8, 512>}, {pipeline_mode = #tpu.pipeline_mode<synchronous>, transform_indices = @transform_1, window_bounds = array<i64: 9, 1, 512>}, {pipeline_mode = #tpu.pipeline_mode<synchronous>, transform_indices = @transform_2, window_bounds = array<i64: 16, 72>}, {pipeline_mode = #tpu.pipeline_mode<synchronous>, transform_indices = @transform_3, window_bounds = array<i64: 16, 1>}, {pipeline_mode = #tpu.pipeline_mode<synchronous>, transform_indices = @transform_4, window_bounds = array<i64: 8, 256>}, {pipeline_mode = #tpu.pipeline_mode<synchronous>, transform_indices = @transform_5, window_bounds = array<i64: 8, 256>}, {pipeline_mode = #tpu.pipeline_mode<synchronous>, transform_indices = @transform_6, window_bounds = array<i64: 8, 72>}, {pipeline_mode = #tpu.pipeline_mode<synchronous>, transform_indices = @transform_7, window_bounds = array<i64: 8, 1>}, {pipeline_mode = #tpu.pipeline_mode<synchronous>, transform_indices = @transform_8, window_bounds = array<i64: 8, 256>}, {pipeline_mode = #tpu.pipeline_mode<synchronous>, transform_indices = @transform_9, window_bounds = array<i64: 8, 256>}, {pipeline_mode = #tpu.pipeline_mode<synchronous>, transform_indices = @transform_10, window_bounds = array<i64: 8, 256>}, {pipeline_mode = #tpu.pipeline_mode<synchronous>, transform_indices = @transform_11, window_bounds = array<i64: 8, 256>}, {transform_indices = @transform_12, window_bounds = array<i64: 8, 512>}]} {
    %c0 = arith.constant 0 : index
    %c0_0 = arith.constant 0 : index
    %0 = vector.load %arg1[%c0, %c0_0] : memref<8x512xf32, #tpu.memory_space<vmem>>, vector<8x512xf32>
    %c0_1 = arith.constant 0 : index
    %c0_2 = arith.constant 0 : index
    %1 = vector.load %arg3[%c0_1, %c0_2] : memref<16x72xf32, #tpu.memory_space<vmem>>, vector<16x72xf32>
    %c17_i32 = arith.constant 17 : i32
    %2 = tpu.dynamic_rotate %0 by %c17_i32 dim 1 : vector<8x512xf32>, i32 -> vector<8x512xf32>
    %c0_3 = arith.constant 0 : index
    %c0_4 = arith.constant 0 : index
    %c0_5 = arith.constant 0 : index
    %3 = vector.load %arg2[%c0_3, %c0_4, %c0_5] : memref<9x1x512xf32, #tpu.memory_space<vmem>>, vector<1x1x512xf32>
    %4 = vector.shape_cast %3 : vector<1x1x512xf32> to vector<1x512xf32>
    %5 = vector.broadcast %4 : vector<1x512xf32> to vector<8x512xf32>
    %6 = arith.mulf %2, %5 : vector<8x512xf32>
    %c16_i32 = arith.constant 16 : i32
    %7 = tpu.dynamic_rotate %0 by %c16_i32 dim 1 : vector<8x512xf32>, i32 -> vector<8x512xf32>
    %c1 = arith.constant 1 : index
    %c0_6 = arith.constant 0 : index
    %c0_7 = arith.constant 0 : index
    %8 = vector.load %arg2[%c1, %c0_6, %c0_7] : memref<9x1x512xf32, #tpu.memory_space<vmem>>, vector<1x1x512xf32>
    %9 = vector.shape_cast %8 : vector<1x1x512xf32> to vector<1x512xf32>
    %10 = vector.broadcast %9 : vector<1x512xf32> to vector<8x512xf32>
    %11 = arith.mulf %7, %10 : vector<8x512xf32>
    %c15_i32 = arith.constant 15 : i32
    %12 = tpu.dynamic_rotate %0 by %c15_i32 dim 1 : vector<8x512xf32>, i32 -> vector<8x512xf32>
    %c2 = arith.constant 2 : index
    %c0_8 = arith.constant 0 : index
    %c0_9 = arith.constant 0 : index
    %13 = vector.load %arg2[%c2, %c0_8, %c0_9] : memref<9x1x512xf32, #tpu.memory_space<vmem>>, vector<1x1x512xf32>
    %14 = vector.shape_cast %13 : vector<1x1x512xf32> to vector<1x512xf32>
    %15 = vector.broadcast %14 : vector<1x512xf32> to vector<8x512xf32>
    %16 = arith.mulf %12, %15 : vector<8x512xf32>
    %c1_i32 = arith.constant 1 : i32
    %17 = tpu.dynamic_rotate %0 by %c1_i32 dim 1 : vector<8x512xf32>, i32 -> vector<8x512xf32>
    %c3 = arith.constant 3 : index
    %c0_10 = arith.constant 0 : index
    %c0_11 = arith.constant 0 : index
    %18 = vector.load %arg2[%c3, %c0_10, %c0_11] : memref<9x1x512xf32, #tpu.memory_space<vmem>>, vector<1x1x512xf32>
    %19 = vector.shape_cast %18 : vector<1x1x512xf32> to vector<1x512xf32>
    %20 = vector.broadcast %19 : vector<1x512xf32> to vector<8x512xf32>
    %21 = arith.mulf %17, %20 : vector<8x512xf32>
    %c511_i32 = arith.constant 511 : i32
    %22 = tpu.dynamic_rotate %0 by %c511_i32 dim 1 : vector<8x512xf32>, i32 -> vector<8x512xf32>
    %c5 = arith.constant 5 : index
    %c0_12 = arith.constant 0 : index
    %c0_13 = arith.constant 0 : index
    %23 = vector.load %arg2[%c5, %c0_12, %c0_13] : memref<9x1x512xf32, #tpu.memory_space<vmem>>, vector<1x1x512xf32>
    %24 = vector.shape_cast %23 : vector<1x1x512xf32> to vector<1x512xf32>
    %25 = vector.broadcast %24 : vector<1x512xf32> to vector<8x512xf32>
    %26 = arith.mulf %22, %25 : vector<8x512xf32>
    %c497_i32 = arith.constant 497 : i32
    %27 = tpu.dynamic_rotate %0 by %c497_i32 dim 1 : vector<8x512xf32>, i32 -> vector<8x512xf32>
    %c6 = arith.constant 6 : index
    %c0_14 = arith.constant 0 : index
    %c0_15 = arith.constant 0 : index
    %28 = vector.load %arg2[%c6, %c0_14, %c0_15] : memref<9x1x512xf32, #tpu.memory_space<vmem>>, vector<1x1x512xf32>
    %29 = vector.shape_cast %28 : vector<1x1x512xf32> to vector<1x512xf32>
    %30 = vector.broadcast %29 : vector<1x512xf32> to vector<8x512xf32>
    %31 = arith.mulf %27, %30 : vector<8x512xf32>
    %c496_i32 = arith.constant 496 : i32
    %32 = tpu.dynamic_rotate %0 by %c496_i32 dim 1 : vector<8x512xf32>, i32 -> vector<8x512xf32>
    %c7 = arith.constant 7 : index
    %c0_16 = arith.constant 0 : index
    %c0_17 = arith.constant 0 : index
    %33 = vector.load %arg2[%c7, %c0_16, %c0_17] : memref<9x1x512xf32, #tpu.memory_space<vmem>>, vector<1x1x512xf32>
    %34 = vector.shape_cast %33 : vector<1x1x512xf32> to vector<1x512xf32>
    %35 = vector.broadcast %34 : vector<1x512xf32> to vector<8x512xf32>
    %36 = arith.mulf %32, %35 : vector<8x512xf32>
    %c495_i32 = arith.constant 495 : i32
    %37 = tpu.dynamic_rotate %0 by %c495_i32 dim 1 : vector<8x512xf32>, i32 -> vector<8x512xf32>
    %c8 = arith.constant 8 : index
    %c0_18 = arith.constant 0 : index
    %c0_19 = arith.constant 0 : index
    %38 = vector.load %arg2[%c8, %c0_18, %c0_19] : memref<9x1x512xf32, #tpu.memory_space<vmem>>, vector<1x1x512xf32>
    %39 = vector.shape_cast %38 : vector<1x1x512xf32> to vector<1x512xf32>
    %40 = vector.broadcast %39 : vector<1x512xf32> to vector<8x512xf32>
    %41 = arith.mulf %37, %40 : vector<8x512xf32>
    %42 = tpu.concatenate %6, %11, %16, %21, %0, %26, %31, %36, %41 in 0 : vector<8x512xf32>, vector<8x512xf32>, vector<8x512xf32>, vector<8x512xf32>, vector<8x512xf32>, vector<8x512xf32>, vector<8x512xf32>, vector<8x512xf32>, vector<8x512xf32> -> vector<72x512xf32>
    %cst = arith.constant dense<0.000000e+00> : vector<16x512xf32>
    %43 = tpu.matmul %1, %42, %cst {dimension_numbers = #tpu.dot_dimension_numbers<[1], [0], [0], [1], [0, 0, 1, 1], [], []>} : vector<16x72xf32>, vector<72x512xf32>, vector<16x512xf32> -> vector<16x512xf32>
    %c0_20 = arith.constant 0 : index
    %c0_21 = arith.constant 0 : index
    %44 = vector.load %arg4[%c0_20, %c0_21] : memref<16x1xf32, #tpu.memory_space<vmem>>, vector<16x1xf32>
    %45 = vector.broadcast %44 : vector<16x1xf32> to vector<16x512xf32>
    %46 = arith.addf %43, %45 : vector<16x512xf32>
    %47 = vector.extract_strided_slice %46 {offsets = [0, 0], sizes = [8, 512], strides = [1, 1]} : vector<16x512xf32> to vector<8x512xf32>
    %c0_22 = arith.constant 0 : index
    %c0_23 = arith.constant 0 : index
    %48 = vector.load %arg5[%c0_22, %c0_23] : memref<8x256xf32, #tpu.memory_space<vmem>>, vector<8x256xf32>
    %c0_24 = arith.constant 0 : index
    %c0_25 = arith.constant 0 : index
    %49 = vector.load %arg6[%c0_24, %c0_25] : memref<8x256xf32, #tpu.memory_space<vmem>>, vector<8x256xf32>
    %50 = vector.extract_strided_slice %47 {offsets = [0, 0], sizes = [8, 256], strides = [1, 1]} : vector<8x512xf32> to vector<8x256xf32>
    %cst_26 = arith.constant dense<0.000000e+00> : vector<8xf32>
    %51 = vector.multi_reduction <add>, %50, %cst_26 [1] : vector<8x256xf32> to vector<8xf32>
    %52 = vector.shape_cast %51 : vector<8xf32> to vector<8x1xf32>
    %cst_27 = arith.constant dense<0.000000e+00> : vector<1xf32>
    %53 = vector.multi_reduction <add>, %52, %cst_27 [0] : vector<8x1xf32> to vector<1xf32>
    %54 = vector.shape_cast %53 : vector<1xf32> to vector<1x1xf32>
    %55 = arith.mulf %50, %50 : vector<8x256xf32>
    %cst_28 = arith.constant dense<0.000000e+00> : vector<8xf32>
    %56 = vector.multi_reduction <add>, %55, %cst_28 [1] : vector<8x256xf32> to vector<8xf32>
    %57 = vector.shape_cast %56 : vector<8xf32> to vector<8x1xf32>
    %cst_29 = arith.constant dense<0.000000e+00> : vector<1xf32>
    %58 = vector.multi_reduction <add>, %57, %cst_29 [0] : vector<8x1xf32> to vector<1xf32>
    %59 = vector.shape_cast %58 : vector<1xf32> to vector<1x1xf32>
    %cst_30 = arith.constant 4.8828125E-4 : f32
    %60 = vector.broadcast %cst_30 : f32 to vector<1x1xf32>
    %61 = arith.mulf %54, %60 : vector<1x1xf32>
    %cst_31 = arith.constant 4.8828125E-4 : f32
    %62 = vector.broadcast %cst_31 : f32 to vector<1x1xf32>
    %63 = arith.mulf %59, %62 : vector<1x1xf32>
    %64 = arith.mulf %61, %61 : vector<1x1xf32>
    %65 = arith.subf %63, %64 : vector<1x1xf32>
    %cst_32 = arith.constant 9.99999974E-6 : f32
    %66 = vector.broadcast %cst_32 : f32 to vector<1x1xf32>
    %67 = arith.addf %65, %66 : vector<1x1xf32>
    %68 = math.rsqrt %67 : vector<1x1xf32>
    %69 = vector.broadcast %61 : vector<1x1xf32> to vector<8x256xf32>
    %70 = arith.subf %50, %69 : vector<8x256xf32>
    %71 = vector.broadcast %68 : vector<1x1xf32> to vector<8x256xf32>
    %72 = arith.mulf %70, %71 : vector<8x256xf32>
    %73 = arith.mulf %72, %48 : vector<8x256xf32>
    %74 = arith.addf %73, %49 : vector<8x256xf32>
    %75 = vector.extract_strided_slice %47 {offsets = [0, 256], sizes = [8, 256], strides = [1, 1]} : vector<8x512xf32> to vector<8x256xf32>
    %cst_33 = arith.constant dense<0.000000e+00> : vector<8xf32>
    %76 = vector.multi_reduction <add>, %75, %cst_33 [1] : vector<8x256xf32> to vector<8xf32>
    %77 = vector.shape_cast %76 : vector<8xf32> to vector<8x1xf32>
    %cst_34 = arith.constant dense<0.000000e+00> : vector<1xf32>
    %78 = vector.multi_reduction <add>, %77, %cst_34 [0] : vector<8x1xf32> to vector<1xf32>
    %79 = vector.shape_cast %78 : vector<1xf32> to vector<1x1xf32>
    %80 = arith.mulf %75, %75 : vector<8x256xf32>
    %cst_35 = arith.constant dense<0.000000e+00> : vector<8xf32>
    %81 = vector.multi_reduction <add>, %80, %cst_35 [1] : vector<8x256xf32> to vector<8xf32>
    %82 = vector.shape_cast %81 : vector<8xf32> to vector<8x1xf32>
    %cst_36 = arith.constant dense<0.000000e+00> : vector<1xf32>
    %83 = vector.multi_reduction <add>, %82, %cst_36 [0] : vector<8x1xf32> to vector<1xf32>
    %84 = vector.shape_cast %83 : vector<1xf32> to vector<1x1xf32>
    %cst_37 = arith.constant 4.8828125E-4 : f32
    %85 = vector.broadcast %cst_37 : f32 to vector<1x1xf32>
    %86 = arith.mulf %79, %85 : vector<1x1xf32>
    %cst_38 = arith.constant 4.8828125E-4 : f32
    %87 = vector.broadcast %cst_38 : f32 to vector<1x1xf32>
    %88 = arith.mulf %84, %87 : vector<1x1xf32>
    %89 = arith.mulf %86, %86 : vector<1x1xf32>
    %90 = arith.subf %88, %89 : vector<1x1xf32>
    %cst_39 = arith.constant 9.99999974E-6 : f32
    %91 = vector.broadcast %cst_39 : f32 to vector<1x1xf32>
    %92 = arith.addf %90, %91 : vector<1x1xf32>
    %93 = math.rsqrt %92 : vector<1x1xf32>
    %94 = vector.broadcast %86 : vector<1x1xf32> to vector<8x256xf32>
    %95 = arith.subf %75, %94 : vector<8x256xf32>
    %96 = vector.broadcast %93 : vector<1x1xf32> to vector<8x256xf32>
    %97 = arith.mulf %95, %96 : vector<8x256xf32>
    %98 = arith.mulf %97, %48 : vector<8x256xf32>
    %99 = arith.addf %98, %49 : vector<8x256xf32>
    %100 = tpu.concatenate %74, %99 in 1 : vector<8x256xf32>, vector<8x256xf32> -> vector<8x512xf32>
    %cst_40 = arith.constant 0.000000e+00 : f32
    %101 = vector.broadcast %cst_40 : f32 to vector<8x512xf32>
    %102 = arith.maximumf %100, %101 : vector<8x512xf32>
    %103 = vector.extract_strided_slice %46 {offsets = [8, 0], sizes = [8, 512], strides = [1, 1]} : vector<16x512xf32> to vector<8x512xf32>
    %c0_41 = arith.constant 0 : index
    %c0_42 = arith.constant 0 : index
    %104 = vector.load %arg11[%c0_41, %c0_42] : memref<8x256xf32, #tpu.memory_space<vmem>>, vector<8x256xf32>
    %c0_43 = arith.constant 0 : index
    %c0_44 = arith.constant 0 : index
    %105 = vector.load %arg12[%c0_43, %c0_44] : memref<8x256xf32, #tpu.memory_space<vmem>>, vector<8x256xf32>
    %106 = vector.extract_strided_slice %103 {offsets = [0, 0], sizes = [8, 256], strides = [1, 1]} : vector<8x512xf32> to vector<8x256xf32>
    %cst_45 = arith.constant dense<0.000000e+00> : vector<8xf32>
    %107 = vector.multi_reduction <add>, %106, %cst_45 [1] : vector<8x256xf32> to vector<8xf32>
    %108 = vector.shape_cast %107 : vector<8xf32> to vector<8x1xf32>
    %cst_46 = arith.constant dense<0.000000e+00> : vector<1xf32>
    %109 = vector.multi_reduction <add>, %108, %cst_46 [0] : vector<8x1xf32> to vector<1xf32>
    %110 = vector.shape_cast %109 : vector<1xf32> to vector<1x1xf32>
    %111 = arith.mulf %106, %106 : vector<8x256xf32>
    %cst_47 = arith.constant dense<0.000000e+00> : vector<8xf32>
    %112 = vector.multi_reduction <add>, %111, %cst_47 [1] : vector<8x256xf32> to vector<8xf32>
    %113 = vector.shape_cast %112 : vector<8xf32> to vector<8x1xf32>
    %cst_48 = arith.constant dense<0.000000e+00> : vector<1xf32>
    %114 = vector.multi_reduction <add>, %113, %cst_48 [0] : vector<8x1xf32> to vector<1xf32>
    %115 = vector.shape_cast %114 : vector<1xf32> to vector<1x1xf32>
    %cst_49 = arith.constant 4.8828125E-4 : f32
    %116 = vector.broadcast %cst_49 : f32 to vector<1x1xf32>
    %117 = arith.mulf %110, %116 : vector<1x1xf32>
    %cst_50 = arith.constant 4.8828125E-4 : f32
    %118 = vector.broadcast %cst_50 : f32 to vector<1x1xf32>
    %119 = arith.mulf %115, %118 : vector<1x1xf32>
    %120 = arith.mulf %117, %117 : vector<1x1xf32>
    %121 = arith.subf %119, %120 : vector<1x1xf32>
    %cst_51 = arith.constant 9.99999974E-6 : f32
    %122 = vector.broadcast %cst_51 : f32 to vector<1x1xf32>
    %123 = arith.addf %121, %122 : vector<1x1xf32>
    %124 = math.rsqrt %123 : vector<1x1xf32>
    %125 = vector.broadcast %117 : vector<1x1xf32> to vector<8x256xf32>
    %126 = arith.subf %106, %125 : vector<8x256xf32>
    %127 = vector.broadcast %124 : vector<1x1xf32> to vector<8x256xf32>
    %128 = arith.mulf %126, %127 : vector<8x256xf32>
    %129 = arith.mulf %128, %104 : vector<8x256xf32>
    %130 = arith.addf %129, %105 : vector<8x256xf32>
    %131 = vector.extract_strided_slice %103 {offsets = [0, 256], sizes = [8, 256], strides = [1, 1]} : vector<8x512xf32> to vector<8x256xf32>
    %cst_52 = arith.constant dense<0.000000e+00> : vector<8xf32>
    %132 = vector.multi_reduction <add>, %131, %cst_52 [1] : vector<8x256xf32> to vector<8xf32>
    %133 = vector.shape_cast %132 : vector<8xf32> to vector<8x1xf32>
    %cst_53 = arith.constant dense<0.000000e+00> : vector<1xf32>
    %134 = vector.multi_reduction <add>, %133, %cst_53 [0] : vector<8x1xf32> to vector<1xf32>
    %135 = vector.shape_cast %134 : vector<1xf32> to vector<1x1xf32>
    %136 = arith.mulf %131, %131 : vector<8x256xf32>
    %cst_54 = arith.constant dense<0.000000e+00> : vector<8xf32>
    %137 = vector.multi_reduction <add>, %136, %cst_54 [1] : vector<8x256xf32> to vector<8xf32>
    %138 = vector.shape_cast %137 : vector<8xf32> to vector<8x1xf32>
    %cst_55 = arith.constant dense<0.000000e+00> : vector<1xf32>
    %139 = vector.multi_reduction <add>, %138, %cst_55 [0] : vector<8x1xf32> to vector<1xf32>
    %140 = vector.shape_cast %139 : vector<1xf32> to vector<1x1xf32>
    %cst_56 = arith.constant 4.8828125E-4 : f32
    %141 = vector.broadcast %cst_56 : f32 to vector<1x1xf32>
    %142 = arith.mulf %135, %141 : vector<1x1xf32>
    %cst_57 = arith.constant 4.8828125E-4 : f32
    %143 = vector.broadcast %cst_57 : f32 to vector<1x1xf32>
    %144 = arith.mulf %140, %143 : vector<1x1xf32>
    %145 = arith.mulf %142, %142 : vector<1x1xf32>
    %146 = arith.subf %144, %145 : vector<1x1xf32>
    %cst_58 = arith.constant 9.99999974E-6 : f32
    %147 = vector.broadcast %cst_58 : f32 to vector<1x1xf32>
    %148 = arith.addf %146, %147 : vector<1x1xf32>
    %149 = math.rsqrt %148 : vector<1x1xf32>
    %150 = vector.broadcast %142 : vector<1x1xf32> to vector<8x256xf32>
    %151 = arith.subf %131, %150 : vector<8x256xf32>
    %152 = vector.broadcast %149 : vector<1x1xf32> to vector<8x256xf32>
    %153 = arith.mulf %151, %152 : vector<8x256xf32>
    %154 = arith.mulf %153, %104 : vector<8x256xf32>
    %155 = arith.addf %154, %105 : vector<8x256xf32>
    %156 = tpu.concatenate %130, %155 in 1 : vector<8x256xf32>, vector<8x256xf32> -> vector<8x512xf32>
    %c0_59 = arith.constant 0 : index
    %c0_60 = arith.constant 0 : index
    %157 = vector.load %arg7[%c0_59, %c0_60] : memref<8x72xf32, #tpu.memory_space<vmem>>, vector<8x72xf32>
    %c17_i32_61 = arith.constant 17 : i32
    %158 = tpu.dynamic_rotate %102 by %c17_i32_61 dim 1 : vector<8x512xf32>, i32 -> vector<8x512xf32>
    %c0_62 = arith.constant 0 : index
    %c0_63 = arith.constant 0 : index
    %c0_64 = arith.constant 0 : index
    %159 = vector.load %arg2[%c0_62, %c0_63, %c0_64] : memref<9x1x512xf32, #tpu.memory_space<vmem>>, vector<1x1x512xf32>
    %160 = vector.shape_cast %159 : vector<1x1x512xf32> to vector<1x512xf32>
    %161 = vector.broadcast %160 : vector<1x512xf32> to vector<8x512xf32>
    %162 = arith.mulf %158, %161 : vector<8x512xf32>
    %c16_i32_65 = arith.constant 16 : i32
    %163 = tpu.dynamic_rotate %102 by %c16_i32_65 dim 1 : vector<8x512xf32>, i32 -> vector<8x512xf32>
    %c1_66 = arith.constant 1 : index
    %c0_67 = arith.constant 0 : index
    %c0_68 = arith.constant 0 : index
    %164 = vector.load %arg2[%c1_66, %c0_67, %c0_68] : memref<9x1x512xf32, #tpu.memory_space<vmem>>, vector<1x1x512xf32>
    %165 = vector.shape_cast %164 : vector<1x1x512xf32> to vector<1x512xf32>
    %166 = vector.broadcast %165 : vector<1x512xf32> to vector<8x512xf32>
    %167 = arith.mulf %163, %166 : vector<8x512xf32>
    %c15_i32_69 = arith.constant 15 : i32
    %168 = tpu.dynamic_rotate %102 by %c15_i32_69 dim 1 : vector<8x512xf32>, i32 -> vector<8x512xf32>
    %c2_70 = arith.constant 2 : index
    %c0_71 = arith.constant 0 : index
    %c0_72 = arith.constant 0 : index
    %169 = vector.load %arg2[%c2_70, %c0_71, %c0_72] : memref<9x1x512xf32, #tpu.memory_space<vmem>>, vector<1x1x512xf32>
    %170 = vector.shape_cast %169 : vector<1x1x512xf32> to vector<1x512xf32>
    %171 = vector.broadcast %170 : vector<1x512xf32> to vector<8x512xf32>
    %172 = arith.mulf %168, %171 : vector<8x512xf32>
    %c1_i32_73 = arith.constant 1 : i32
    %173 = tpu.dynamic_rotate %102 by %c1_i32_73 dim 1 : vector<8x512xf32>, i32 -> vector<8x512xf32>
    %c3_74 = arith.constant 3 : index
    %c0_75 = arith.constant 0 : index
    %c0_76 = arith.constant 0 : index
    %174 = vector.load %arg2[%c3_74, %c0_75, %c0_76] : memref<9x1x512xf32, #tpu.memory_space<vmem>>, vector<1x1x512xf32>
    %175 = vector.shape_cast %174 : vector<1x1x512xf32> to vector<1x512xf32>
    %176 = vector.broadcast %175 : vector<1x512xf32> to vector<8x512xf32>
    %177 = arith.mulf %173, %176 : vector<8x512xf32>
    %c511_i32_77 = arith.constant 511 : i32
    %178 = tpu.dynamic_rotate %102 by %c511_i32_77 dim 1 : vector<8x512xf32>, i32 -> vector<8x512xf32>
    %c5_78 = arith.constant 5 : index
    %c0_79 = arith.constant 0 : index
    %c0_80 = arith.constant 0 : index
    %179 = vector.load %arg2[%c5_78, %c0_79, %c0_80] : memref<9x1x512xf32, #tpu.memory_space<vmem>>, vector<1x1x512xf32>
    %180 = vector.shape_cast %179 : vector<1x1x512xf32> to vector<1x512xf32>
    %181 = vector.broadcast %180 : vector<1x512xf32> to vector<8x512xf32>
    %182 = arith.mulf %178, %181 : vector<8x512xf32>
    %c497_i32_81 = arith.constant 497 : i32
    %183 = tpu.dynamic_rotate %102 by %c497_i32_81 dim 1 : vector<8x512xf32>, i32 -> vector<8x512xf32>
    %c6_82 = arith.constant 6 : index
    %c0_83 = arith.constant 0 : index
    %c0_84 = arith.constant 0 : index
    %184 = vector.load %arg2[%c6_82, %c0_83, %c0_84] : memref<9x1x512xf32, #tpu.memory_space<vmem>>, vector<1x1x512xf32>
    %185 = vector.shape_cast %184 : vector<1x1x512xf32> to vector<1x512xf32>
    %186 = vector.broadcast %185 : vector<1x512xf32> to vector<8x512xf32>
    %187 = arith.mulf %183, %186 : vector<8x512xf32>
    %c496_i32_85 = arith.constant 496 : i32
    %188 = tpu.dynamic_rotate %102 by %c496_i32_85 dim 1 : vector<8x512xf32>, i32 -> vector<8x512xf32>
    %c7_86 = arith.constant 7 : index
    %c0_87 = arith.constant 0 : index
    %c0_88 = arith.constant 0 : index
    %189 = vector.load %arg2[%c7_86, %c0_87, %c0_88] : memref<9x1x512xf32, #tpu.memory_space<vmem>>, vector<1x1x512xf32>
    %190 = vector.shape_cast %189 : vector<1x1x512xf32> to vector<1x512xf32>
    %191 = vector.broadcast %190 : vector<1x512xf32> to vector<8x512xf32>
    %192 = arith.mulf %188, %191 : vector<8x512xf32>
    %c495_i32_89 = arith.constant 495 : i32
    %193 = tpu.dynamic_rotate %102 by %c495_i32_89 dim 1 : vector<8x512xf32>, i32 -> vector<8x512xf32>
    %c8_90 = arith.constant 8 : index
    %c0_91 = arith.constant 0 : index
    %c0_92 = arith.constant 0 : index
    %194 = vector.load %arg2[%c8_90, %c0_91, %c0_92] : memref<9x1x512xf32, #tpu.memory_space<vmem>>, vector<1x1x512xf32>
    %195 = vector.shape_cast %194 : vector<1x1x512xf32> to vector<1x512xf32>
    %196 = vector.broadcast %195 : vector<1x512xf32> to vector<8x512xf32>
    %197 = arith.mulf %193, %196 : vector<8x512xf32>
    %198 = tpu.concatenate %162, %167, %172, %177, %102, %182, %187, %192, %197 in 0 : vector<8x512xf32>, vector<8x512xf32>, vector<8x512xf32>, vector<8x512xf32>, vector<8x512xf32>, vector<8x512xf32>, vector<8x512xf32>, vector<8x512xf32>, vector<8x512xf32> -> vector<72x512xf32>
    %cst_93 = arith.constant dense<0.000000e+00> : vector<8x512xf32>
    %199 = tpu.matmul %157, %198, %cst_93 {dimension_numbers = #tpu.dot_dimension_numbers<[1], [0], [0], [1], [0, 0, 1, 1], [], []>} : vector<8x72xf32>, vector<72x512xf32>, vector<8x512xf32> -> vector<8x512xf32>
    %c0_94 = arith.constant 0 : index
    %c0_95 = arith.constant 0 : index
    %200 = vector.load %arg8[%c0_94, %c0_95] : memref<8x1xf32, #tpu.memory_space<vmem>>, vector<8x1xf32>
    %201 = vector.broadcast %200 : vector<8x1xf32> to vector<8x512xf32>
    %202 = arith.addf %199, %201 : vector<8x512xf32>
    %c0_96 = arith.constant 0 : index
    %c0_97 = arith.constant 0 : index
    %203 = vector.load %arg9[%c0_96, %c0_97] : memref<8x256xf32, #tpu.memory_space<vmem>>, vector<8x256xf32>
    %c0_98 = arith.constant 0 : index
    %c0_99 = arith.constant 0 : index
    %204 = vector.load %arg10[%c0_98, %c0_99] : memref<8x256xf32, #tpu.memory_space<vmem>>, vector<8x256xf32>
    %205 = vector.extract_strided_slice %202 {offsets = [0, 0], sizes = [8, 256], strides = [1, 1]} : vector<8x512xf32> to vector<8x256xf32>
    %cst_100 = arith.constant dense<0.000000e+00> : vector<8xf32>
    %206 = vector.multi_reduction <add>, %205, %cst_100 [1] : vector<8x256xf32> to vector<8xf32>
    %207 = vector.shape_cast %206 : vector<8xf32> to vector<8x1xf32>
    %cst_101 = arith.constant dense<0.000000e+00> : vector<1xf32>
    %208 = vector.multi_reduction <add>, %207, %cst_101 [0] : vector<8x1xf32> to vector<1xf32>
    %209 = vector.shape_cast %208 : vector<1xf32> to vector<1x1xf32>
    %210 = arith.mulf %205, %205 : vector<8x256xf32>
    %cst_102 = arith.constant dense<0.000000e+00> : vector<8xf32>
    %211 = vector.multi_reduction <add>, %210, %cst_102 [1] : vector<8x256xf32> to vector<8xf32>
    %212 = vector.shape_cast %211 : vector<8xf32> to vector<8x1xf32>
    %cst_103 = arith.constant dense<0.000000e+00> : vector<1xf32>
    %213 = vector.multi_reduction <add>, %212, %cst_103 [0] : vector<8x1xf32> to vector<1xf32>
    %214 = vector.shape_cast %213 : vector<1xf32> to vector<1x1xf32>
    %cst_104 = arith.constant 4.8828125E-4 : f32
    %215 = vector.broadcast %cst_104 : f32 to vector<1x1xf32>
    %216 = arith.mulf %209, %215 : vector<1x1xf32>
    %cst_105 = arith.constant 4.8828125E-4 : f32
    %217 = vector.broadcast %cst_105 : f32 to vector<1x1xf32>
    %218 = arith.mulf %214, %217 : vector<1x1xf32>
    %219 = arith.mulf %216, %216 : vector<1x1xf32>
    %220 = arith.subf %218, %219 : vector<1x1xf32>
    %cst_106 = arith.constant 9.99999974E-6 : f32
    %221 = vector.broadcast %cst_106 : f32 to vector<1x1xf32>
    %222 = arith.addf %220, %221 : vector<1x1xf32>
    %223 = math.rsqrt %222 : vector<1x1xf32>
    %224 = vector.broadcast %216 : vector<1x1xf32> to vector<8x256xf32>
    %225 = arith.subf %205, %224 : vector<8x256xf32>
    %226 = vector.broadcast %223 : vector<1x1xf32> to vector<8x256xf32>
    %227 = arith.mulf %225, %226 : vector<8x256xf32>
    %228 = arith.mulf %227, %203 : vector<8x256xf32>
    %229 = arith.addf %228, %204 : vector<8x256xf32>
    %230 = vector.extract_strided_slice %202 {offsets = [0, 256], sizes = [8, 256], strides = [1, 1]} : vector<8x512xf32> to vector<8x256xf32>
    %cst_107 = arith.constant dense<0.000000e+00> : vector<8xf32>
    %231 = vector.multi_reduction <add>, %230, %cst_107 [1] : vector<8x256xf32> to vector<8xf32>
    %232 = vector.shape_cast %231 : vector<8xf32> to vector<8x1xf32>
    %cst_108 = arith.constant dense<0.000000e+00> : vector<1xf32>
    %233 = vector.multi_reduction <add>, %232, %cst_108 [0] : vector<8x1xf32> to vector<1xf32>
    %234 = vector.shape_cast %233 : vector<1xf32> to vector<1x1xf32>
    %235 = arith.mulf %230, %230 : vector<8x256xf32>
    %cst_109 = arith.constant dense<0.000000e+00> : vector<8xf32>
    %236 = vector.multi_reduction <add>, %235, %cst_109 [1] : vector<8x256xf32> to vector<8xf32>
    %237 = vector.shape_cast %236 : vector<8xf32> to vector<8x1xf32>
    %cst_110 = arith.constant dense<0.000000e+00> : vector<1xf32>
    %238 = vector.multi_reduction <add>, %237, %cst_110 [0] : vector<8x1xf32> to vector<1xf32>
    %239 = vector.shape_cast %238 : vector<1xf32> to vector<1x1xf32>
    %cst_111 = arith.constant 4.8828125E-4 : f32
    %240 = vector.broadcast %cst_111 : f32 to vector<1x1xf32>
    %241 = arith.mulf %234, %240 : vector<1x1xf32>
    %cst_112 = arith.constant 4.8828125E-4 : f32
    %242 = vector.broadcast %cst_112 : f32 to vector<1x1xf32>
    %243 = arith.mulf %239, %242 : vector<1x1xf32>
    %244 = arith.mulf %241, %241 : vector<1x1xf32>
    %245 = arith.subf %243, %244 : vector<1x1xf32>
    %cst_113 = arith.constant 9.99999974E-6 : f32
    %246 = vector.broadcast %cst_113 : f32 to vector<1x1xf32>
    %247 = arith.addf %245, %246 : vector<1x1xf32>
    %248 = math.rsqrt %247 : vector<1x1xf32>
    %249 = vector.broadcast %241 : vector<1x1xf32> to vector<8x256xf32>
    %250 = arith.subf %230, %249 : vector<8x256xf32>
    %251 = vector.broadcast %248 : vector<1x1xf32> to vector<8x256xf32>
    %252 = arith.mulf %250, %251 : vector<8x256xf32>
    %253 = arith.mulf %252, %203 : vector<8x256xf32>
    %254 = arith.addf %253, %204 : vector<8x256xf32>
    %255 = tpu.concatenate %229, %254 in 1 : vector<8x256xf32>, vector<8x256xf32> -> vector<8x512xf32>
    %cst_114 = arith.constant 0.000000e+00 : f32
    %256 = vector.broadcast %cst_114 : f32 to vector<8x512xf32>
    %257 = arith.maximumf %255, %256 : vector<8x512xf32>
    %258 = arith.addf %257, %156 : vector<8x512xf32>
    %c0_115 = arith.constant 0 : index
    %c0_116 = arith.constant 0 : index
    %259 = vector.load %arg13[%c0_115, %c0_116] : memref<8x512xf32, #tpu.memory_space<vmem>>, vector<8x512xf32>
    tpu.vector_store %arg13[%c0_115, %c0_116], %258 {strides = array<i32>} : memref<8x512xf32, #tpu.memory_space<vmem>>, vector<8x512xf32>,
    return
  }
  func.func @transform_0(%arg0: i32) -> (i32, i32) {
    %c0_i32 = arith.constant 0 : i32
    %c0_i32_0 = arith.constant 0 : i32
    return %c0_i32, %arg0 : i32, i32
  }
  func.func @transform_1(%arg0: i32) -> (i32, i32, i32) {
    %c0_i32 = arith.constant 0 : i32
    %c0_i32_0 = arith.constant 0 : i32
    %c0_i32_1 = arith.constant 0 : i32
    %c0_i32_2 = arith.constant 0 : i32
    return %c0_i32, %c0_i32_0, %c0_i32_1 : i32, i32, i32
  }
  func.func @transform_2(%arg0: i32) -> (i32, i32) {
    %c0_i32 = arith.constant 0 : i32
    %c0_i32_0 = arith.constant 0 : i32
    %c0_i32_1 = arith.constant 0 : i32
    return %c0_i32, %c0_i32_0 : i32, i32
  }
  func.func @transform_3(%arg0: i32) -> (i32, i32) {
    %c0_i32 = arith.constant 0 : i32
    %c0_i32_0 = arith.constant 0 : i32
    %c0_i32_1 = arith.constant 0 : i32
    return %c0_i32, %c0_i32_0 : i32, i32
  }
  func.func @transform_4(%arg0: i32) -> (i32, i32) {
    %c0_i32 = arith.constant 0 : i32
    %c0_i32_0 = arith.constant 0 : i32
    %c0_i32_1 = arith.constant 0 : i32
    return %c0_i32, %c0_i32_0 : i32, i32
  }
  func.func @transform_5(%arg0: i32) -> (i32, i32) {
    %c0_i32 = arith.constant 0 : i32
    %c0_i32_0 = arith.constant 0 : i32
    %c0_i32_1 = arith.constant 0 : i32
    return %c0_i32, %c0_i32_0 : i32, i32
  }
  func.func @transform_6(%arg0: i32) -> (i32, i32) {
    %c0_i32 = arith.constant 0 : i32
    %c0_i32_0 = arith.constant 0 : i32
    %c0_i32_1 = arith.constant 0 : i32
    return %c0_i32, %c0_i32_0 : i32, i32
  }
  func.func @transform_7(%arg0: i32) -> (i32, i32) {
    %c0_i32 = arith.constant 0 : i32
    %c0_i32_0 = arith.constant 0 : i32
    %c0_i32_1 = arith.constant 0 : i32
    return %c0_i32, %c0_i32_0 : i32, i32
  }
  func.func @transform_8(%arg0: i32) -> (i32, i32) {
    %c0_i32 = arith.constant 0 : i32
    %c0_i32_0 = arith.constant 0 : i32
    %c0_i32_1 = arith.constant 0 : i32
    return %c0_i32, %c0_i32_0 : i32, i32
  }
  func.func @transform_9(%arg0: i32) -> (i32, i32) {
    %c0_i32 = arith.constant 0 : i32
    %c0_i32_0 = arith.constant 0 : i32
    %c0_i32_1 = arith.constant 0 : i32
    return %c0_i32, %c0_i32_0 : i32, i32
  }
  func.func @transform_10(%arg0: i32) -> (i32, i32) {
    %c0_i32 = arith.constant 0 : i32
    %c0_i32_0 = arith.constant 0 : i32
    %c0_i32_1 = arith.constant 0 : i32
    return %c0_i32, %c0_i32_0 : i32, i32
  }
  func.func @transform_11(%arg0: i32) -> (i32, i32) {
    %c0_i32 = arith.constant 0 : i32
    %c0_i32_0 = arith.constant 0 : i32
    %c0_i32_1 = arith.constant 0 : i32
    return %c0_i32, %c0_i32_0 : i32, i32
  }
  func.func @transform_12(%arg0: i32) -> (i32, i32) {
    %c0_i32 = arith.constant 0 : i32
    %c0_i32_0 = arith.constant 0 : i32
    return %c0_i32, %arg0 : i32, i32
  }
}

</mosaic_0001>

<llo_original>
// kernel: tpu_custom_call.1
$region0: #{tpu_custom_call.1}
  #allocation0 [shape = 'u32[]', space=smem, size = 0x4, offset = 0x4, fixed_abs, tag = 'smem constant byte address 0x4 - core index']
  #allocation1 [shape = 'u32[72,128]{1,0:T(1,128)}', space=vmem, size = 0x9000, scoped, tag = 'internal scratch']
  %s0 = inlined_call_operand.hbm [shape: f32[8,1024], index: 0, kind: input, shape index: {}]
  %s1 = inlined_call_operand.hbm [shape: f32[9,1,512], index: 1, kind: input, shape index: {}]
  %s2 = inlined_call_operand.vmem [shape: f32[16,72], index: 2, kind: input, shape index: {}]
  %s3 = inlined_call_operand.vmem [shape: f32[16,1], index: 3, kind: input, shape index: {}]
  %s4 = inlined_call_operand.hbm [shape: f32[8,256], index: 4, kind: input, shape index: {}]
  %s5 = inlined_call_operand.hbm [shape: f32[8,256], index: 5, kind: input, shape index: {}]
  %s6 = inlined_call_operand.hbm [shape: f32[8,72], index: 6, kind: input, shape index: {}]
  %s7 = inlined_call_operand.vmem [shape: f32[8,1], index: 7, kind: input, shape index: {}]
  %s8 = inlined_call_operand.vmem [shape: f32[8,256], index: 8, kind: input, shape index: {}]
  %s9 = inlined_call_operand.hbm [shape: f32[8,256], index: 9, kind: input, shape index: {}]
  %s10 = inlined_call_operand.hbm [shape: f32[8,256], index: 10, kind: input, shape index: {}]
  %s11 = inlined_call_operand.hbm [shape: f32[8,256], index: 11, kind: input, shape index: {}]
  %s12 = inlined_call_operand.hbm [shape: f32[8,1024], index: 12, kind: output, shape index: {}]
  %s13 = sld [smem:[#allocation0]]
  $region113: #{tpu_custom_call.1} parent=0
    _
  %s15 = ssub.s32 1, %s13
  %s16 = scalar_select 0, %s15, %s13
  $region1: #{tpu_custom_call.1} parent=0
    #allocation2 [shape = 'u8[32768]{0}', space=vmem, size = 0x8000, scoped, tag = 'input window, operand 0']
    #allocation3 [shape = 's32[2]{0}', space=sflag, size = 0x8, scoped, tag = 'scoped memory for tpu_custom_call.1']
    #allocation4 [shape = 's32[2]{0}', space=sflag, size = 0x8, scoped, tag = 'scoped memory for tpu_custom_call.1']
    #allocation5 [shape = 'u8[18432]{0}', space=vmem, size = 0x4800, scoped, tag = 'input window, operand 1, single buffered']
    #allocation6 [shape = 's32[1]{0}', space=sflag, size = 0x4, scoped, tag = 'scoped memory for tpu_custom_call.1']
    #allocation7 [shape = 'u8[8192]{0}', space=vmem, size = 0x2000, scoped, tag = 'input window, operand 4, single buffered']
    #allocation8 [shape = 'u8[8192]{0}', space=vmem, size = 0x2000, scoped, tag = 'input window, operand 5, single buffered']
    #allocation9 [shape = 's32[1]{0}', space=sflag, size = 0x4, scoped, tag = 'scoped memory for tpu_custom_call.1']
    #allocation10 [shape = 'u8[4096]{0}', space=vmem, size = 0x1000, scoped, tag = 'input window, operand 6, single buffered']
    #allocation11 [shape = 'u8[8192]{0}', space=vmem, size = 0x2000, scoped, tag = 'input window, operand 9, single buffered']
    #allocation12 [shape = 's32[1]{0}', space=sflag, size = 0x4, scoped, tag = 'scoped memory for tpu_custom_call.1']
    #allocation13 [shape = 'u8[8192]{0}', space=vmem, size = 0x2000, scoped, tag = 'input window, operand 10, single buffered']
    #allocation14 [shape = 'u8[8192]{0}', space=vmem, size = 0x2000, scoped, tag = 'input window, operand 11, single buffered']
    #allocation15 [shape = 's32[1]{0}', space=sflag, size = 0x4, scoped, tag = 'scoped memory for tpu_custom_call.1']
    #allocation16 [shape = 'u8[32768]{0}', space=vmem, size = 0x8000, scoped, tag = 'output window, operand 0']
    %17 = vsyncpa [#allocation3], 0
    %s18 = scalar_lea.sflag [#allocation3], 1
    %19 = vsyncpa %s18, 0
    %20 = vsyncpa [#allocation6], 0
    %21 = vsyncpa [#allocation9], 0
    %22 = vsyncpa [#allocation12], 0
    %23 = vsyncpa [#allocation15], 0
    %24 = vsyncpa [#allocation4], 0
    %s25 = scalar_lea.sflag [#allocation4], 1
    %26 = vsyncpa %s25, 0
    loop: start=0, step=1, limit=4
    $region2: #{tpu_custom_call.1} parent=1 // loop_pre_header
      _
    $region3: #{tpu_custom_call.1} parent=1 // loop_header
      %s28 = sphi 0, %s32
      %p29 = scmp.ge.s32.totalorder %s28, 4
      %s38 = sphi 0, %s40
      %s41 = sphi 0, %s38
      %s42 = sphi 0, %s41
      %s58 = sphi 0, %s42
      %s62 = sphi 0, %s62
      %s64 = sphi 0, %s62
      %s65 = sphi 0, %s64
      %s79 = sphi 0, %s65
      %s83 = sphi 0, %s83
      %s85 = sphi 0, %s83
      %s86 = sphi 0, %s85
      %s100 = sphi 0, %s86
      %s104 = sphi 0, %s104
      %s106 = sphi 0, %s104
      %s107 = sphi 0, %s106
      %s121 = sphi 0, %s107
      %s125 = sphi 0, %s125
      %s127 = sphi 0, %s125
      %s128 = sphi 0, %s127
      %s142 = sphi 0, %s128
      %s146 = sphi 0, %s146
      %s148 = sphi 0, %s146
      %s149 = sphi 0, %s148
      %s163 = sphi 0, %s149
      %s167 = sphi 0, %s167
      %s169 = sphi 0, %s167
      %s170 = sphi 0, %s169
      %s184 = sphi 0, %s170
      %s188 = sphi 0, %s188
      %s190 = sphi 0, %s188
      %s191 = sphi 0, %s190
      %s205 = sphi 0, %s191
      %s209 = sphi 0, %s209
      %s211 = sphi 0, %s209
      %s212 = sphi 0, %s211
      %s226 = sphi 0, %s212
      %s230 = sphi 0, %s230
      %s232 = sphi 0, %s230
      %s233 = sphi 0, %s232
      %s247 = sphi 0, %s233
      %s251 = sphi 0, %s251
      %s253 = sphi 0, %s251
      %s254 = sphi 0, %s253
      %s268 = sphi 0, %s254
      %s272 = sphi 0, %s272
      %s274 = sphi 0, %s272
      %s275 = sphi 0, %s274
      %s289 = sphi 0, %s275
      %s295 = sphi 0, %s297
      %s298 = sphi 0, %s295
      %s299 = sphi 0, %s298
      %s315 = sphi 0, %s299
    $region4: #{tpu_custom_call.1} parent=1 // loop_header_branch
      %31 = sbr.rel (%p29) target = $region8
    $region5: #{tpu_custom_call.1} parent=1 // loop_body
      %s33 = ssub.s32 %s28, 1
      %s34 = ssub.s32 %s28, 2
      %s35 = sadd.s32 %s28, 1
      %s36 = ssub.s32 %s28, %s35
      %p37 = scmp.eq.s32.totalorder %s36, 0
      %s39 = sadd.s32 %s38, 1
      %s40 = scalar_select %p37, %s38, %s39
      %p43 = pneg %p37
      %p44 = scmp.eq.s32.totalorder %s28, 1
      %p45 = por %p43, %p44
      %p46 = scmp.ne.s32.totalorder %s38, %s41
      %p47 = scmp.eq.s32.totalorder %s28, 0
      %p48 = por %p46, %p47
      %p49 = scmp.ne.s32.totalorder %s38, %s41
      %p50 = scmp.eq.s32.totalorder %s33, 1
      %p51 = por %p49, %p50
      %p52 = scmp.ne.s32.totalorder %s41, %s42
      %p53 = scmp.eq.s32.totalorder %s33, 0
      %p54 = por %p52, %p53
      %p55 = scmp.ne.s32.totalorder %s41, %s42
      %p56 = scmp.eq.s32.totalorder %s34, 1
      %p57 = por %p55, %p56
      %p59 = scmp.ne.s32.totalorder %s42, %s58
      %p60 = scmp.eq.s32.totalorder %s34, 0
      %p61 = por %p59, %p60
      %s63 = sadd.s32 %s62, 1
      %p66 = scmp.eq.s32.totalorder %s28, 1
      %p67 = scmp.ne.s32.totalorder %s62, %s64
      %p68 = scmp.eq.s32.totalorder %s28, 0
      %p69 = por %p67, %p68
      %p70 = scmp.ne.s32.totalorder %s62, %s64
      %p71 = scmp.eq.s32.totalorder %s33, 1
      %p72 = por %p70, %p71
      %p73 = scmp.ne.s32.totalorder %s64, %s65
      %p74 = scmp.eq.s32.totalorder %s33, 0
      %p75 = por %p73, %p74
      %p76 = scmp.ne.s32.totalorder %s64, %s65
      %p77 = scmp.eq.s32.totalorder %s34, 1
      %p78 = por %p76, %p77
      %p80 = scmp.ne.s32.totalorder %s65, %s79
      %p81 = scmp.eq.s32.totalorder %s34, 0
      %p82 = por %p80, %p81
      %s84 = sadd.s32 %s83, 1
      %p87 = scmp.eq.s32.totalorder %s28, 1
      %p88 = scmp.ne.s32.totalorder %s83, %s85
      %p89 = scmp.eq.s32.totalorder %s28, 0
      %p90 = por %p88, %p89
      %p91 = scmp.ne.s32.totalorder %s83, %s85
      %p92 = scmp.eq.s32.totalorder %s33, 1
      %p93 = por %p91, %p92
      %p94 = scmp.ne.s32.totalorder %s85, %s86
      %p95 = scmp.eq.s32.totalorder %s33, 0
      %p96 = por %p94, %p95
      %p97 = scmp.ne.s32.totalorder %s85, %s86
      %p98 = scmp.eq.s32.totalorder %s34, 1
      %p99 = por %p97, %p98
      %p101 = scmp.ne.s32.totalorder %s86, %s100
      %p102 = scmp.eq.s32.totalorder %s34, 0
      %p103 = por %p101, %p102
      %s105 = sadd.s32 %s104, 1
      %p108 = scmp.eq.s32.totalorder %s28, 1
      %p109 = scmp.ne.s32.totalorder %s104, %s106
      %p110 = scmp.eq.s32.totalorder %s28, 0
      %p111 = por %p109, %p110
      %p112 = scmp.ne.s32.totalorder %s104, %s106
      %p113 = scmp.eq.s32.totalorder %s33, 1
      %p114 = por %p112, %p113
      %p115 = scmp.ne.s32.totalorder %s106, %s107
      %p116 = scmp.eq.s32.totalorder %s33, 0
      %p117 = por %p115, %p116
      %p118 = scmp.ne.s32.totalorder %s106, %s107
      %p119 = scmp.eq.s32.totalorder %s34, 1
      %p120 = por %p118, %p119
      %p122 = scmp.ne.s32.totalorder %s107, %s121
      %p123 = scmp.eq.s32.totalorder %s34, 0
      %p124 = por %p122, %p123
      %s126 = sadd.s32 %s125, 1
      %p129 = scmp.eq.s32.totalorder %s28, 1
      %p130 = scmp.ne.s32.totalorder %s125, %s127
      %p131 = scmp.eq.s32.totalorder %s28, 0
      %p132 = por %p130, %p131
      %p133 = scmp.ne.s32.totalorder %s125, %s127
      %p134 = scmp.eq.s32.totalorder %s33, 1
      %p135 = por %p133, %p134
      %p136 = scmp.ne.s32.totalorder %s127, %s128
      %p137 = scmp.eq.s32.totalorder %s33, 0
      %p138 = por %p136, %p137
      %p139 = scmp.ne.s32.totalorder %s127, %s128
      %p140 = scmp.eq.s32.totalorder %s34, 1
      %p141 = por %p139, %p140
      %p143 = scmp.ne.s32.totalorder %s128, %s142
      %p144 = scmp.eq.s32.totalorder %s34, 0
      %p145 = por %p143, %p144
      %s147 = sadd.s32 %s146, 1
      %p150 = scmp.eq.s32.totalorder %s28, 1
      %p151 = scmp.ne.s32.totalorder %s146, %s148
      %p152 = scmp.eq.s32.totalorder %s28, 0
      %p153 = por %p151, %p152
      %p154 = scmp.ne.s32.totalorder %s146, %s148
      %p155 = scmp.eq.s32.totalorder %s33, 1
      %p156 = por %p154, %p155
      %p157 = scmp.ne.s32.totalorder %s148, %s149
      %p158 = scmp.eq.s32.totalorder %s33, 0
      %p159 = por %p157, %p158
      %p160 = scmp.ne.s32.totalorder %s148, %s149
      %p161 = scmp.eq.s32.totalorder %s34, 1
      %p162 = por %p160, %p161
      %p164 = scmp.ne.s32.totalorder %s149, %s163
      %p165 = scmp.eq.s32.totalorder %s34, 0
      %p166 = por %p164, %p165
      %s168 = sadd.s32 %s167, 1
      %p171 = scmp.eq.s32.totalorder %s28, 1
      %p172 = scmp.ne.s32.totalorder %s167, %s169
      %p173 = scmp.eq.s32.totalorder %s28, 0
      %p174 = por %p172, %p173
      %p175 = scmp.ne.s32.totalorder %s167, %s169
      %p176 = scmp.eq.s32.totalorder %s33, 1
      %p177 = por %p175, %p176
      %p178 = scmp.ne.s32.totalorder %s169, %s170
      %p179 = scmp.eq.s32.totalorder %s33, 0
      %p180 = por %p178, %p179
      %p181 = scmp.ne.s32.totalorder %s169, %s170
      %p182 = scmp.eq.s32.totalorder %s34, 1
      %p183 = por %p181, %p182
      %p185 = scmp.ne.s32.totalorder %s170, %s184
      %p186 = scmp.eq.s32.totalorder %s34, 0
      %p187 = por %p185, %p186
      %s189 = sadd.s32 %s188, 1
      %p192 = scmp.eq.s32.totalorder %s28, 1
      %p193 = scmp.ne.s32.totalorder %s188, %s190
      %p194 = scmp.eq.s32.totalorder %s28, 0
      %p195 = por %p193, %p194
      %p196 = scmp.ne.s32.totalorder %s188, %s190
      %p197 = scmp.eq.s32.totalorder %s33, 1
      %p198 = por %p196, %p197
      %p199 = scmp.ne.s32.totalorder %s190, %s191
      %p200 = scmp.eq.s32.totalorder %s33, 0
      %p201 = por %p199, %p200
      %p202 = scmp.ne.s32.totalorder %s190, %s191
      %p203 = scmp.eq.s32.totalorder %s34, 1
      %p204 = por %p202, %p203
      %p206 = scmp.ne.s32.totalorder %s191, %s205
      %p207 = scmp.eq.s32.totalorder %s34, 0
      %p208 = por %p206, %p207
      %s210 = sadd.s32 %s209, 1
      %p213 = scmp.eq.s32.totalorder %s28, 1
      %p214 = scmp.ne.s32.totalorder %s209, %s211
      %p215 = scmp.eq.s32.totalorder %s28, 0
      %p216 = por %p214, %p215
      %p217 = scmp.ne.s32.totalorder %s209, %s211
      %p218 = scmp.eq.s32.totalorder %s33, 1
      %p219 = por %p217, %p218
      %p220 = scmp.ne.s32.totalorder %s211, %s212
      %p221 = scmp.eq.s32.totalorder %s33, 0
      %p222 = por %p220, %p221
      %p223 = scmp.ne.s32.totalorder %s211, %s212
      %p224 = scmp.eq.s32.totalorder %s34, 1
      %p225 = por %p223, %p224
      %p227 = scmp.ne.s32.totalorder %s212, %s226
      %p228 = scmp.eq.s32.totalorder %s34, 0
      %p229 = por %p227, %p228
      %s231 = sadd.s32 %s230, 1
      %p234 = scmp.eq.s32.totalorder %s28, 1
      %p235 = scmp.ne.s32.totalorder %s230, %s232
      %p236 = scmp.eq.s32.totalorder %s28, 0
      %p237 = por %p235, %p236
      %p238 = scmp.ne.s32.totalorder %s230, %s232
      %p239 = scmp.eq.s32.totalorder %s33, 1
      %p240 = por %p238, %p239
      %p241 = scmp.ne.s32.totalorder %s232, %s233
      %p242 = scmp.eq.s32.totalorder %s33, 0
      %p243 = por %p241, %p242
      %p244 = scmp.ne.s32.totalorder %s232, %s233
      %p245 = scmp.eq.s32.totalorder %s34, 1
      %p246 = por %p244, %p245
      %p248 = scmp.ne.s32.totalorder %s233, %s247
      %p249 = scmp.eq.s32.totalorder %s34, 0
      %p250 = por %p248, %p249
      %s252 = sadd.s32 %s251, 1
      %p255 = scmp.eq.s32.totalorder %s28, 1
      %p256 = scmp.ne.s32.totalorder %s251, %s253
      %p257 = scmp.eq.s32.totalorder %s28, 0
      %p258 = por %p256, %p257
      %p259 = scmp.ne.s32.totalorder %s251, %s253
      %p260 = scmp.eq.s32.totalorder %s33, 1
      %p261 = por %p259, %p260
      %p262 = scmp.ne.s32.totalorder %s253, %s254
      %p263 = scmp.eq.s32.totalorder %s33, 0
      %p264 = por %p262, %p263
      %p265 = scmp.ne.s32.totalorder %s253, %s254
      %p266 = scmp.eq.s32.totalorder %s34, 1
      %p267 = por %p265, %p266
      %p269 = scmp.ne.s32.totalorder %s254, %s268
      %p270 = scmp.eq.s32.totalorder %s34, 0
      %p271 = por %p269, %p270
      %s273 = sadd.s32 %s272, 1
      %p276 = scmp.eq.s32.totalorder %s28, 1
      %p277 = scmp.ne.s32.totalorder %s272, %s274
      %p278 = scmp.eq.s32.totalorder %s28, 0
      %p279 = por %p277, %p278
      %p280 = scmp.ne.s32.totalorder %s272, %s274
      %p281 = scmp.eq.s32.totalorder %s33, 1
      %p282 = por %p280, %p281
      %p283 = scmp.ne.s32.totalorder %s274, %s275
      %p284 = scmp.eq.s32.totalorder %s33, 0
      %p285 = por %p283, %p284
      %p286 = scmp.ne.s32.totalorder %s274, %s275
      %p287 = scmp.eq.s32.totalorder %s34, 1
      %p288 = por %p286, %p287
      %p290 = scmp.ne.s32.totalorder %s275, %s289
      %p291 = scmp.eq.s32.totalorder %s34, 0
      %p292 = por %p290, %p291
      %s293 = ssub.s32 %s28, %s35
      %p294 = scmp.eq.s32.totalorder %s293, 0
      %s296 = sadd.s32 %s295, 1
      %s297 = scalar_select %p294, %s295, %s296
      %p300 = pneg %p294
      %p301 = scmp.eq.s32.totalorder %s28, 1
      %p302 = por %p300, %p301
      %p303 = scmp.ne.s32.totalorder %s295, %s298
      %p304 = scmp.eq.s32.totalorder %s28, 0
      %p305 = por %p303, %p304
      %p306 = scmp.ne.s32.totalorder %s295, %s298
      %p307 = scmp.eq.s32.totalorder %s33, 1
      %p308 = por %p306, %p307
      %p309 = scmp.ne.s32.totalorder %s298, %s299
      %p310 = scmp.eq.s32.totalorder %s33, 0
      %p311 = por %p309, %p310
      %p312 = scmp.ne.s32.totalorder %s298, %s299
      %p313 = scmp.eq.s32.totalorder %s34, 1
      %p314 = por %p312, %p313
      %p316 = scmp.ne.s32.totalorder %s299, %s315
      %p317 = scmp.eq.s32.totalorder %s34, 0
      %p318 = por %p316, %p317
      %p319 = scmp.le.s32.totalorder 1, %s28
      %p320 = scmp.lt.s32.totalorder %s28, 3
      %p321 = pnand %p319, %p320
      %p322 = pneg %p321
      // Predicated region
      $region9: #{tpu_custom_call.1} parent=5 // pred_check
        _
      $region10: #{tpu_custom_call.1} parent=5 // pred_check_branch
        %324 = sbr.rel (%p321) target = $region12
      $region11: #{tpu_custom_call.1} parent=5 // pred_region
        %s325 = ssub.s32 %s28, 1
        // Predicated region
        $region13: #{tpu_custom_call.1} parent=11 // pred_check
          %p326 = pneg %p75
        $region14: #{tpu_custom_call.1} parent=11 // pred_check_branch
          %328 = sbr.rel (%p326) target = $region16
        $region15: #{tpu_custom_call.1} parent=11 // pred_region
          %330 = vsyncadd [#allocation6], 0
          %s331 = sshll.u32 %s1, 4
          %s332 = int_to_ptr.hbm [resolvable:$true] %s331
          %s333 = sshll.u32 [#allocation5], 4
          %s334 = int_to_ptr.vmem [resolvable:$true] %s333
          %339 = dma.hbm_to_vmem [thread:$0]  %s332, 576, %s334, [#allocation6], 64, 64, 4
        $region16: #{tpu_custom_call.1} parent=11 // pred_fallthru
          _
        // Predicated region
        $region17: #{tpu_custom_call.1} parent=11 // pred_check
          %p340 = pneg %p96
        $region18: #{tpu_custom_call.1} parent=11 // pred_check_branch
          %342 = sbr.rel (%p340) target = $region20
        $region19: #{tpu_custom_call.1} parent=11 // pred_region
          _
        $region20: #{tpu_custom_call.1} parent=11 // pred_fallthru
          _
        // Predicated region
        $region21: #{tpu_custom_call.1} parent=11 // pred_check
          %p343 = pneg %p117
        $region22: #{tpu_custom_call.1} parent=11 // pred_check_branch
          %345 = sbr.rel (%p343) target = $region24
        $region23: #{tpu_custom_call.1} parent=11 // pred_region
          _
        $region24: #{tpu_custom_call.1} parent=11 // pred_fallthru
          _
        // Predicated region
        $region25: #{tpu_custom_call.1} parent=11 // pred_check
          %p346 = pneg %p138
        $region26: #{tpu_custom_call.1} parent=11 // pred_check_branch
          %348 = sbr.rel (%p346) target = $region28
        $region27: #{tpu_custom_call.1} parent=11 // pred_region
          %350 = vsyncadd [#allocation6], 0
          %s352 = sshll.u32 %s4, 4
          %s353 = int_to_ptr.hbm [resolvable:$true] %s352
          %s354 = sshll.u32 [#allocation7], 4
          %s355 = int_to_ptr.vmem [resolvable:$true] %s354
          %357 = dma.hbm_to_vmem [thread:$0]  %s353, 256, %s355, [#allocation6]
        $region28: #{tpu_custom_call.1} parent=11 // pred_fallthru
          _
        // Predicated region
        $region29: #{tpu_custom_call.1} parent=11 // pred_check
          %p358 = pneg %p159
        $region30: #{tpu_custom_call.1} parent=11 // pred_check_branch
          %360 = sbr.rel (%p358) target = $region32
        $region31: #{tpu_custom_call.1} parent=11 // pred_region
          %362 = vsyncadd [#allocation9], 0
          %s364 = sshll.u32 %s5, 4
          %s365 = int_to_ptr.hbm [resolvable:$true] %s364
          %s366 = sshll.u32 [#allocation8], 4
          %s367 = int_to_ptr.vmem [resolvable:$true] %s366
          %369 = dma.hbm_to_vmem [thread:$0]  %s365, 256, %s367, [#allocation9]
        $region32: #{tpu_custom_call.1} parent=11 // pred_fallthru
          _
        // Predicated region
        $region33: #{tpu_custom_call.1} parent=11 // pred_check
          %p370 = pneg %p180
        $region34: #{tpu_custom_call.1} parent=11 // pred_check_branch
          %372 = sbr.rel (%p370) target = $region36
        $region35: #{tpu_custom_call.1} parent=11 // pred_region
          %374 = vsyncadd [#allocation9], 0
          %s376 = sshll.u32 %s6, 4
          %s377 = int_to_ptr.hbm [resolvable:$true] %s376
          %s378 = sshll.u32 [#allocation10], 4
          %s379 = int_to_ptr.vmem [resolvable:$true] %s378
          %381 = dma.hbm_to_vmem [thread:$0]  %s377, 128, %s379, [#allocation9]
        $region36: #{tpu_custom_call.1} parent=11 // pred_fallthru
          _
        // Predicated region
        $region37: #{tpu_custom_call.1} parent=11 // pred_check
          %p382 = pneg %p201
        $region38: #{tpu_custom_call.1} parent=11 // pred_check_branch
          %384 = sbr.rel (%p382) target = $region40
        $region39: #{tpu_custom_call.1} parent=11 // pred_region
          _
        $region40: #{tpu_custom_call.1} parent=11 // pred_fallthru
          _
        // Predicated region
        $region41: #{tpu_custom_call.1} parent=11 // pred_check
          %p385 = pneg %p222
        $region42: #{tpu_custom_call.1} parent=11 // pred_check_branch
          %387 = sbr.rel (%p385) target = $region44
        $region43: #{tpu_custom_call.1} parent=11 // pred_region
          _
        $region44: #{tpu_custom_call.1} parent=11 // pred_fallthru
          _
        // Predicated region
        $region45: #{tpu_custom_call.1} parent=11 // pred_check
          %p388 = pneg %p243
        $region46: #{tpu_custom_call.1} parent=11 // pred_check_branch
          %390 = sbr.rel (%p388) target = $region48
        $region47: #{tpu_custom_call.1} parent=11 // pred_region
          %392 = vsyncadd [#allocation12], 0
          %s394 = sshll.u32 %s9, 4
          %s395 = int_to_ptr.hbm [resolvable:$true] %s394
          %s396 = sshll.u32 [#allocation11], 4
          %s397 = int_to_ptr.vmem [resolvable:$true] %s396
          %399 = dma.hbm_to_vmem [thread:$0]  %s395, 256, %s397, [#allocation12]
        $region48: #{tpu_custom_call.1} parent=11 // pred_fallthru
          _
        // Predicated region
        $region49: #{tpu_custom_call.1} parent=11 // pred_check
          %p400 = pneg %p264
        $region50: #{tpu_custom_call.1} parent=11 // pred_check_branch
          %402 = sbr.rel (%p400) target = $region52
        $region51: #{tpu_custom_call.1} parent=11 // pred_region
          %404 = vsyncadd [#allocation12], 0
          %s406 = sshll.u32 %s10, 4
          %s407 = int_to_ptr.hbm [resolvable:$true] %s406
          %s408 = sshll.u32 [#allocation13], 4
          %s409 = int_to_ptr.vmem [resolvable:$true] %s408
          %411 = dma.hbm_to_vmem [thread:$0]  %s407, 256, %s409, [#allocation12]
        $region52: #{tpu_custom_call.1} parent=11 // pred_fallthru
          _
        // Predicated region
        $region53: #{tpu_custom_call.1} parent=11 // pred_check
          %p412 = pneg %p285
        $region54: #{tpu_custom_call.1} parent=11 // pred_check_branch
          %414 = sbr.rel (%p412) target = $region56
        $region55: #{tpu_custom_call.1} parent=11 // pred_region
          %416 = vsyncadd [#allocation15], 0
          %s418 = sshll.u32 %s11, 4
          %s419 = int_to_ptr.hbm [resolvable:$true] %s418
          %s420 = sshll.u32 [#allocation14], 4
          %s421 = int_to_ptr.vmem [resolvable:$true] %s420
          %423 = dma.hbm_to_vmem [thread:$0]  %s419, 256, %s421, [#allocation15]
        $region56: #{tpu_custom_call.1} parent=11 // pred_fallthru
          _
      $region12: #{tpu_custom_call.1} parent=5 // pred_fallthru
        _
      %p424 = scmp.lt.s32.totalorder %s28, 2
      // Predicated region
      $region57: #{tpu_custom_call.1} parent=5 // pred_check
        %p425 = pneg %p424
      $region58: #{tpu_custom_call.1} parent=5 // pred_check_branch
        %427 = sbr.rel (%p425) target = $region60
      $region59: #{tpu_custom_call.1} parent=5 // pred_region
        // Predicated region
        $region61: #{tpu_custom_call.1} parent=59 // pred_check
          %p428 = pneg %p48
        $region62: #{tpu_custom_call.1} parent=59 // pred_check_branch
          %430 = sbr.rel (%p428) target = $region64
        $region63: #{tpu_custom_call.1} parent=59 // pred_region
          %s431 = sand.u32 %s38, 1
          %s432 = scalar_lea.sflag [#allocation3], %s431
          %s433 = sand.u32 %s38, 1
          %s434 = smul.addr %s433, 32
          %s435 = scalar_lea.vmem [#allocation2], %s434
          %s436 = smul.u32 4, %s28
          %438 = vsyncadd %s432, 0
          %s439 = smul.addr %s436, 8
          %s440 = scalar_lea.hbm %s0, %s439
          %s442 = sshll.u32 %s440, 4
          %s443 = int_to_ptr.hbm [resolvable:$true] %s442
          %s444 = sshll.u32 %s435, 4
          %s445 = int_to_ptr.vmem [resolvable:$true] %s444
          %447 = dma.hbm_to_vmem [thread:$0]  %s443, 512, %s445, %s432
        $region64: #{tpu_custom_call.1} parent=59 // pred_fallthru
          _
      $region60: #{tpu_custom_call.1} parent=5 // pred_fallthru
        _
      %p448 = scmp.le.s32.totalorder 1, %s28
      %p449 = scmp.lt.s32.totalorder %s28, 3
      %p450 = pnand %p448, %p449
      %p451 = pneg %p450
      // Predicated region
      $region65: #{tpu_custom_call.1} parent=5 // pred_check
        _
      $region66: #{tpu_custom_call.1} parent=5 // pred_check_branch
        %453 = sbr.rel (%p450) target = $region68
      $region67: #{tpu_custom_call.1} parent=5 // pred_region
        %s454 = ssub.s32 %s28, 1
        %s455 = sand.u32 %s41, 1
        %s456 = scalar_lea.sflag [#allocation3], %s455
        %s457 = sand.u32 %s41, 1
        %s458 = smul.addr %s457, 32
        %s459 = scalar_lea.vmem [#allocation2], %s458
        // Predicated region
        $region69: #{tpu_custom_call.1} parent=67 // pred_check
          %p460 = pneg %p54
        $region70: #{tpu_custom_call.1} parent=67 // pred_check_branch
          %462 = sbr.rel (%p460) target = $region72
        $region71: #{tpu_custom_call.1} parent=67 // pred_region
          %464 = dma.done %s456, 512
        $region72: #{tpu_custom_call.1} parent=67 // pred_fallthru
          _
        // Predicated region
        $region73: #{tpu_custom_call.1} parent=67 // pred_check
          %p465 = pneg %p75
        $region74: #{tpu_custom_call.1} parent=67 // pred_check_branch
          %467 = sbr.rel (%p465) target = $region76
        $region75: #{tpu_custom_call.1} parent=67 // pred_region
          %469 = dma.done [#allocation6], 576
        $region76: #{tpu_custom_call.1} parent=67 // pred_fallthru
          _
        // Predicated region
        $region77: #{tpu_custom_call.1} parent=67 // pred_check
          %p470 = pneg %p138
        $region78: #{tpu_custom_call.1} parent=67 // pred_check_branch
          %472 = sbr.rel (%p470) target = $region80
        $region79: #{tpu_custom_call.1} parent=67 // pred_region
          %474 = dma.done [#allocation6], 256
        $region80: #{tpu_custom_call.1} parent=67 // pred_fallthru
          _
        // Predicated region
        $region81: #{tpu_custom_call.1} parent=67 // pred_check
          %p475 = pneg %p159
        $region82: #{tpu_custom_call.1} parent=67 // pred_check_branch
          %477 = sbr.rel (%p475) target = $region84
        $region83: #{tpu_custom_call.1} parent=67 // pred_region
          %479 = dma.done [#allocation9], 256
        $region84: #{tpu_custom_call.1} parent=67 // pred_fallthru
          _
        // Predicated region
        $region85: #{tpu_custom_call.1} parent=67 // pred_check
          %p480 = pneg %p180
        $region86: #{tpu_custom_call.1} parent=67 // pred_check_branch
          %482 = sbr.rel (%p480) target = $region88
        $region87: #{tpu_custom_call.1} parent=67 // pred_region
          %484 = dma.done [#allocation9], 128
        $region88: #{tpu_custom_call.1} parent=67 // pred_fallthru
          _
        // Predicated region
        $region89: #{tpu_custom_call.1} parent=67 // pred_check
          %p485 = pneg %p243
        $region90: #{tpu_custom_call.1} parent=67 // pred_check_branch
          %487 = sbr.rel (%p485) target = $region92
        $region91: #{tpu_custom_call.1} parent=67 // pred_region
          %489 = dma.done [#allocation12], 256
        $region92: #{tpu_custom_call.1} parent=67 // pred_fallthru
          _
        // Predicated region
        $region93: #{tpu_custom_call.1} parent=67 // pred_check
          %p490 = pneg %p264
        $region94: #{tpu_custom_call.1} parent=67 // pred_check_branch
          %492 = sbr.rel (%p490) target = $region96
        $region95: #{tpu_custom_call.1} parent=67 // pred_region
          %494 = dma.done [#allocation12], 256
        $region96: #{tpu_custom_call.1} parent=67 // pred_fallthru
          _
        // Predicated region
        $region97: #{tpu_custom_call.1} parent=67 // pred_check
          %p495 = pneg %p285
        $region98: #{tpu_custom_call.1} parent=67 // pred_check_branch
          %497 = sbr.rel (%p495) target = $region100
        $region99: #{tpu_custom_call.1} parent=67 // pred_region
          %499 = dma.done [#allocation15], 256
        $region100: #{tpu_custom_call.1} parent=67 // pred_fallthru
          _
        %s500 = sand.u32 %s41, 1
        %s501 = scalar_lea.sflag [#allocation3], %s500
        %s502 = sand.u32 %s41, 1
        %s503 = smul.addr %s502, 32
        %s504 = scalar_lea.vmem [#allocation2], %s503
        %p505 = pneg %p54
        %p506 = pneg %p51
        %p507 = pneg %p75
        %p508 = pneg %p72
        %p509 = pneg %p96
        %p510 = pneg %p93
        %p511 = pneg %p117
        %p512 = pneg %p114
        %p513 = pneg %p138
        %p514 = pneg %p135
        %p515 = pneg %p159
        %p516 = pneg %p156
        %p517 = pneg %p180
        %p518 = pneg %p177
        %p519 = pneg %p201
        %p520 = pneg %p198
        %p521 = pneg %p222
        %p522 = pneg %p219
        %p523 = pneg %p243
        %p524 = pneg %p240
        %p525 = pneg %p264
        %p526 = pneg %p261
        %p527 = pneg %p285
        %p528 = pneg %p282
        %p529 = pneg %p311
        %p530 = pneg %p308
        %s531 = sand.u32 %s298, 1
        %s532 = scalar_lea.sflag [#allocation4], %s531
        %s533 = sand.u32 %s298, 1
        %s534 = smul.addr %s533, 32
        %s535 = scalar_lea.vmem [#allocation16], %s534
        %s536 = smul.u32 4, %s33
        %s537 = smul.u32 4, %s33
        %v538 = vld [vmem:[%s459] sm:$0xff]
        %v539 = vld [vmem:[%s459 + $0x8] sm:$0xff]
        %v540 = vld [vmem:[%s459 + $0x10] sm:$0xff]
        %v541 = vld [vmem:[%s459 + $0x18] sm:$0xff]
        %v542 = vld [vmem:[%s2] sm:$0xff]
        %v543 = vld [vmem:[%s2 + $0x8] sm:$0xff]
        %544 = vrot.lane.b32.xlu0 %v538, 17
        %v545 = vpop.permute.xlu0 %544
        %546 = vrot.lane.b32.xlu0 %v539, 17
        %v547 = vpop.permute.xlu0 %546
        %548 = vrot.lane.b32.xlu0 %v540, 17
        %v549 = vpop.permute.xlu0 %548
        %550 = vrot.lane.b32.xlu0 %v541, 17
        %v551 = vpop.permute.xlu0 %550
        %v552 = vlaneseq
        %v553 = vand.u32 %v552, 127
        %vm554 = vcmp.lt.s32.totalorder %v553, 17
        %v555 = vsel %vm554, %v549, %v551
        %v556 = vsel %vm554, %v547, %v549
        %v557 = vsel %vm554, %v545, %v547
        %v558 = vsel %vm554, %v551, %v545
        %v559 = vld [vmem:[#allocation5] sm:$0xf]
        %v561 = vperm.slane %v559, 0
        %v562 = vperm.slane %v559, 1
        %v563 = vperm.slane %v559, 2
        %v564 = vperm.slane %v559, 3
        %v569 = vmul.f32 %v558, %v561
        %v570 = vmul.f32 %v557, %v562
        %v571 = vmul.f32 %v556, %v563
        %v572 = vmul.f32 %v555, %v564
        %573 = vrot.lane.b32.xlu0 %v538, 16
        %v574 = vpop.permute.xlu0 %573
        %575 = vrot.lane.b32.xlu0 %v539, 16
        %v576 = vpop.permute.xlu0 %575
        %577 = vrot.lane.b32.xlu0 %v540, 16
        %v578 = vpop.permute.xlu0 %577
        %579 = vrot.lane.b32.xlu0 %v541, 16
        %v580 = vpop.permute.xlu0 %579
        %vm581 = vcmp.lt.s32.totalorder %v553, 16
        %v582 = vsel %vm581, %v578, %v580
        %v583 = vsel %vm581, %v576, %v578
        %v584 = vsel %vm581, %v574, %v576
        %v585 = vsel %vm581, %v580, %v574
        %s586 = scalar_lea.vmem [#allocation5], 4
        %v587 = vld [vmem:[%s586] sm:$0xf]
        %v589 = vperm.slane %v587, 0
        %v590 = vperm.slane %v587, 1
        %v591 = vperm.slane %v587, 2
        %v592 = vperm.slane %v587, 3
        %v597 = vmul.f32 %v585, %v589
        %v598 = vmul.f32 %v584, %v590
        %v599 = vmul.f32 %v583, %v591
        %v600 = vmul.f32 %v582, %v592
        %601 = vrot.lane.b32.xlu0 %v538, 15
        %v602 = vpop.permute.xlu0 %601
        %603 = vrot.lane.b32.xlu0 %v539, 15
        %v604 = vpop.permute.xlu0 %603
        %605 = vrot.lane.b32.xlu0 %v540, 15
        %v606 = vpop.permute.xlu0 %605
        %607 = vrot.lane.b32.xlu0 %v541, 15
        %v608 = vpop.permute.xlu0 %607
        %vm609 = vcmp.lt.s32.totalorder %v553, 15
        %v610 = vsel %vm609, %v606, %v608
        %v611 = vsel %vm609, %v604, %v606
        %v612 = vsel %vm609, %v602, %v604
        %v613 = vsel %vm609, %v608, %v602
        %s614 = scalar_lea.vmem [#allocation5], 8
        %v615 = vld [vmem:[%s614] sm:$0xf]
        %v617 = vperm.slane %v615, 0
        %v618 = vperm.slane %v615, 1
        %v619 = vperm.slane %v615, 2
        %v620 = vperm.slane %v615, 3
        %v625 = vmul.f32 %v613, %v617
        %v626 = vmul.f32 %v612, %v618
        %v627 = vmul.f32 %v611, %v619
        %v628 = vmul.f32 %v610, %v620
        %629 = vrot.lane.b32.xlu0 %v538, 1
        %v630 = vpop.permute.xlu0 %629
        %631 = vrot.lane.b32.xlu0 %v539, 1
        %v632 = vpop.permute.xlu0 %631
        %633 = vrot.lane.b32.xlu0 %v540, 1
        %v634 = vpop.permute.xlu0 %633
        %635 = vrot.lane.b32.xlu0 %v541, 1
        %v636 = vpop.permute.xlu0 %635
        %vm637 = vcmp.lt.s32.totalorder %v553, 1
        %v638 = vsel %vm637, %v634, %v636
        %v639 = vsel %vm637, %v632, %v634
        %v640 = vsel %vm637, %v630, %v632
        %v641 = vsel %vm637, %v636, %v630
        %s642 = scalar_lea.vmem [#allocation5], 12
        %v643 = vld [vmem:[%s642] sm:$0xf]
        %v645 = vperm.slane %v643, 0
        %v646 = vperm.slane %v643, 1
        %v647 = vperm.slane %v643, 2
        %v648 = vperm.slane %v643, 3
        %v653 = vmul.f32 %v641, %v645
        %v654 = vmul.f32 %v640, %v646
        %v655 = vmul.f32 %v639, %v647
        %v656 = vmul.f32 %v638, %v648
        %657 = vrot.lane.b32.xlu0 %v538, 127
        %v658 = vpop.permute.xlu0 %657
        %659 = vrot.lane.b32.xlu0 %v539, 127
        %v660 = vpop.permute.xlu0 %659
        %661 = vrot.lane.b32.xlu0 %v540, 127
        %v662 = vpop.permute.xlu0 %661
        %663 = vrot.lane.b32.xlu0 %v541, 127
        %v664 = vpop.permute.xlu0 %663
        %vm665 = vcmp.lt.s32.totalorder %v553, 127
        %v666 = vsel %vm665, %v662, %v664
        %v667 = vsel %vm665, %v660, %v662
        %v668 = vsel %vm665, %v658, %v660
        %v669 = vsel %vm665, %v664, %v658
        %s670 = scalar_lea.vmem [#allocation5], 20
        %v671 = vld [vmem:[%s670] sm:$0xf]
        %v673 = vperm.slane %v671, 0
        %v674 = vperm.slane %v671, 1
        %v675 = vperm.slane %v671, 2
        %v676 = vperm.slane %v671, 3
        %v681 = vmul.f32 %v668, %v673
        %v682 = vmul.f32 %v667, %v674
        %v683 = vmul.f32 %v666, %v675
        %v684 = vmul.f32 %v669, %v676
        %685 = vrot.lane.b32.xlu0 %v538, 113
        %v686 = vpop.permute.xlu0 %685
        %687 = vrot.lane.b32.xlu0 %v539, 113
        %v688 = vpop.permute.xlu0 %687
        %689 = vrot.lane.b32.xlu0 %v540, 113
        %v690 = vpop.permute.xlu0 %689
        %691 = vrot.lane.b32.xlu0 %v541, 113
        %v692 = vpop.permute.xlu0 %691
        %vm693 = vcmp.lt.s32.totalorder %v553, 113
        %v694 = vsel %vm693, %v690, %v692
        %v695 = vsel %vm693, %v688, %v690
        %v696 = vsel %vm693, %v686, %v688
        %v697 = vsel %vm693, %v692, %v686
        %s698 = scalar_lea.vmem [#allocation5], 24
        %v699 = vld [vmem:[%s698] sm:$0xf]
        %v701 = vperm.slane %v699, 0
        %v702 = vperm.slane %v699, 1
        %v703 = vperm.slane %v699, 2
        %v704 = vperm.slane %v699, 3
        %v709 = vmul.f32 %v696, %v701
        %v710 = vmul.f32 %v695, %v702
        %v711 = vmul.f32 %v694, %v703
        %v712 = vmul.f32 %v697, %v704
        %713 = vrot.lane.b32.xlu0 %v538, 112
        %v714 = vpop.permute.xlu0 %713
        %715 = vrot.lane.b32.xlu0 %v539, 112
        %v716 = vpop.permute.xlu0 %715
        %717 = vrot.lane.b32.xlu0 %v540, 112
        %v718 = vpop.permute.xlu0 %717
        %719 = vrot.lane.b32.xlu0 %v541, 112
        %v720 = vpop.permute.xlu0 %719
        %vm721 = vcmp.lt.s32.totalorder %v553, 112
        %v722 = vsel %vm721, %v718, %v720
        %v723 = vsel %vm721, %v716, %v718
        %v724 = vsel %vm721, %v714, %v716
        %v725 = vsel %vm721, %v720, %v714
        %s726 = scalar_lea.vmem [#allocation5], 28
        %v727 = vld [vmem:[%s726] sm:$0xf]
        %v729 = vperm.slane %v727, 0
        %v730 = vperm.slane %v727, 1
        %v731 = vperm.slane %v727, 2
        %v732 = vperm.slane %v727, 3
        %v737 = vmul.f32 %v724, %v729
        %v738 = vmul.f32 %v723, %v730
        %v739 = vmul.f32 %v722, %v731
        %v740 = vmul.f32 %v725, %v732
        %741 = vrot.lane.b32.xlu0 %v538, 111
        %v742 = vpop.permute.xlu0 %741
        %743 = vrot.lane.b32.xlu0 %v539, 111
        %v744 = vpop.permute.xlu0 %743
        %745 = vrot.lane.b32.xlu0 %v540, 111
        %v746 = vpop.permute.xlu0 %745
        %747 = vrot.lane.b32.xlu0 %v541, 111
        %v748 = vpop.permute.xlu0 %747
        %vm749 = vcmp.lt.s32.totalorder %v553, 111
        %v750 = vsel %vm749, %v746, %v748
        %v751 = vsel %vm749, %v744, %v746
        %v752 = vsel %vm749, %v742, %v744
        %v753 = vsel %vm749, %v748, %v742
        %s754 = scalar_lea.vmem [#allocation5], 32
        %v755 = vld [vmem:[%s754] sm:$0xf]
        %v757 = vperm.slane %v755, 0
        %v758 = vperm.slane %v755, 1
        %v759 = vperm.slane %v755, 2
        %v760 = vperm.slane %v755, 3
        %v765 = vmul.f32 %v752, %v757
        %v766 = vmul.f32 %v751, %v758
        %v767 = vmul.f32 %v750, %v759
        %v768 = vmul.f32 %v753, %v760
        %v769 = vld [vmem:[%s3] sm:$0xff]
        %v770 = vld [vmem:[%s3 + $0x8] sm:$0xff]
        %772 = vset.pattern.permute.xlu0 0
        %773 = vperm.xlu0 %772, %v769
        %v774 = vpop.permute.xlu0 %773
        %777 = vset.pattern.permute.xlu0 0
        %778 = vperm.xlu0 %777, %v770
        %v779 = vpop.permute.xlu0 %778
        %vm781 = vcmask 588800
        %v783 = vsel %vm781, %v542, 0
        %v786 = vsel %vm781, %v543, 0
        %788 = vmatpush.msra.mxu0 0.0
        %789 = vmatpush.msra.mxu0 0.0
        %790 = vmatpush.msra.mxu0 0.0
        %791 = vmatpush.msra.mxu0 0.0
        %792 = vmatpush.msra.mxu0 0.0
        %793 = vmatpush.msra.mxu0 0.0
        %794 = vmatpush.msra.mxu0 0.0
        %795 = vmatpush.msra.mxu0 %v765
        %796 = vmatpush.msra.mxu0 %v737
        %797 = vmatpush.msra.mxu0 %v709
        %798 = vmatpush.msra.mxu0 %v681
        %799 = vmatpush.msra.mxu0 %v538
        %800 = vmatpush.msra.mxu0 %v653
        %801 = vmatpush.msra.mxu0 %v625
        %802 = vmatpush.msra.mxu0 %v597
        %803 = vmatpush.msra.mxu0 %v569
        %804 = vmatmul.f32.gmra.mxu0 %v783
        %v805 = vpop.f32.mrf.mxu0
        %v806 = vadd.f32 %v774, %v805
        %807 = vmatmul.f32.gmra.mxu0 %v786
        %v808 = vpop.f32.mrf.mxu0
        %v809 = vadd.f32 %v779, %v808
        %810 = vdwg.mxu0
        %811 = vmatpush.msra.mxu0 0.0
        %812 = vmatpush.msra.mxu0 0.0
        %813 = vmatpush.msra.mxu0 0.0
        %814 = vmatpush.msra.mxu0 0.0
        %815 = vmatpush.msra.mxu0 0.0
        %816 = vmatpush.msra.mxu0 0.0
        %817 = vmatpush.msra.mxu0 0.0
        %818 = vmatpush.msra.mxu0 %v766
        %819 = vmatpush.msra.mxu0 %v738
        %820 = vmatpush.msra.mxu0 %v710
        %821 = vmatpush.msra.mxu0 %v682
        %822 = vmatpush.msra.mxu0 %v539
        %823 = vmatpush.msra.mxu0 %v654
        %824 = vmatpush.msra.mxu0 %v626
        %825 = vmatpush.msra.mxu0 %v598
        %826 = vmatpush.msra.mxu0 %v570
        %827 = vmatmul.f32.gmra.mxu0 %v783
        %v828 = vpop.f32.mrf.mxu0
        %v829 = vadd.f32 %v774, %v828
        %830 = vmatmul.f32.gmra.mxu0 %v786
        %v831 = vpop.f32.mrf.mxu0
        %v832 = vadd.f32 %v779, %v831
        %833 = vdwg.mxu0
        %834 = vmatpush.msra.mxu0 0.0
        %835 = vmatpush.msra.mxu0 0.0
        %836 = vmatpush.msra.mxu0 0.0
        %837 = vmatpush.msra.mxu0 0.0
        %838 = vmatpush.msra.mxu0 0.0
        %839 = vmatpush.msra.mxu0 0.0
        %840 = vmatpush.msra.mxu0 0.0
        %841 = vmatpush.msra.mxu0 %v767
        %842 = vmatpush.msra.mxu0 %v739
        %843 = vmatpush.msra.mxu0 %v711
        %844 = vmatpush.msra.mxu0 %v683
        %845 = vmatpush.msra.mxu0 %v540
        %846 = vmatpush.msra.mxu0 %v655
        %847 = vmatpush.msra.mxu0 %v627
        %848 = vmatpush.msra.mxu0 %v599
        %849 = vmatpush.msra.mxu0 %v571
        %850 = vmatmul.f32.gmra.mxu0 %v783
        %v851 = vpop.f32.mrf.mxu0
        %v852 = vadd.f32 %v774, %v851
        %853 = vmatmul.f32.gmra.mxu0 %v786
        %v854 = vpop.f32.mrf.mxu0
        %v855 = vadd.f32 %v779, %v854
        %856 = vdwg.mxu0
        %857 = vmatpush.msra.mxu0 0.0
        %858 = vmatpush.msra.mxu0 0.0
        %859 = vmatpush.msra.mxu0 0.0
        %860 = vmatpush.msra.mxu0 0.0
        %861 = vmatpush.msra.mxu0 0.0
        %862 = vmatpush.msra.mxu0 0.0
        %863 = vmatpush.msra.mxu0 0.0
        %864 = vmatpush.msra.mxu0 %v768
        %865 = vmatpush.msra.mxu0 %v740
        %866 = vmatpush.msra.mxu0 %v712
        %867 = vmatpush.msra.mxu0 %v684
        %868 = vmatpush.msra.mxu0 %v541
        %869 = vmatpush.msra.mxu0 %v656
        %870 = vmatpush.msra.mxu0 %v628
        %871 = vmatpush.msra.mxu0 %v600
        %872 = vmatpush.msra.mxu0 %v572
        %873 = vmatmul.f32.gmra.mxu0 %v783
        %v874 = vpop.f32.mrf.mxu0
        %v875 = vadd.f32 %v774, %v874
        %876 = vmatmul.f32.gmra.mxu0 %v786
        %v877 = vpop.f32.mrf.mxu0
        %v878 = vadd.f32 %v779, %v877
        %879 = vdwg.mxu0
        %v880 = vld [vmem:[#allocation7] sm:$0xff]
        %v881 = vld [vmem:[#allocation7 + $0x8] sm:$0xff]
        %v882 = vld [vmem:[#allocation8] sm:$0xff]
        %v883 = vld [vmem:[#allocation8 + $0x8] sm:$0xff]
        %v884 = vadd.f32 %v806, %v829
        %885 = vadd.xlane.f32.xlu0 %v884
        %v886 = vpop.xlane.xlu0 %885
        %v887 = vrot.slane %v886, 4
        %v888 = vadd.f32 %v886, %v887
        %v889 = vrot.slane %v888, 2
        %v890 = vadd.f32 %v888, %v889
        %v891 = vrot.slane %v890, 1
        %v892 = vadd.f32 %v890, %v891
        %v893 = vmul.f32 %v806, %v806
        %v894 = vmul.f32 %v829, %v829
        %v895 = vadd.f32 %v893, %v894
        %896 = vadd.xlane.f32.xlu0 %v895
        %v897 = vpop.xlane.xlu0 %896
        %v898 = vrot.slane %v897, 4
        %v899 = vadd.f32 %v897, %v898
        %v900 = vrot.slane %v899, 2
        %v901 = vadd.f32 %v899, %v900
        %v902 = vrot.slane %v901, 1
        %v903 = vadd.f32 %v901, %v902
        %v904 = vmul.f32 %v892, 0.00048828125
        %v905 = vmul.f32 %v903, 0.00048828125
        %v906 = vmul.f32 %v904, %v904
        %v907 = vsub.f32 %v905, %v906
        %v908 = vadd.f32 %v907, 1e-05
        %v909 = vrsqrt.pop %v908
        %v910 = vmul.f32 %v909, %v908
        %v911 = vmul.f32 %v910, %v909
        %v912 = vmul.f32 0.5, %v911
        %v913 = vsub.f32 1.5, %v912
        %v914 = vmul.f32 %v909, %v913
        %vm915 = vweird.f32 %v908
        %vm916 = vweird.f32 %v909
        %vm917 = vmor %vm915, %vm916
        %v918 = vsel %vm917, %v909, %v914
        %v919 = vsub.f32 %v806, %v904
        %v920 = vsub.f32 %v829, %v904
        %v921 = vmul.f32 %v919, %v918
        %v922 = vmul.f32 %v920, %v918
        %v923 = vmul.f32 %v921, %v880
        %v924 = vmul.f32 %v922, %v881
        %v925 = vadd.f32 %v923, %v882
        %v926 = vadd.f32 %v924, %v883
        %v927 = vadd.f32 %v852, %v875
        %928 = vadd.xlane.f32.xlu0 %v927
        %v929 = vpop.xlane.xlu0 %928
        %v930 = vrot.slane %v929, 4
        %v931 = vadd.f32 %v929, %v930
        %v932 = vrot.slane %v931, 2
        %v933 = vadd.f32 %v931, %v932
        %v934 = vrot.slane %v933, 1
        %v935 = vadd.f32 %v933, %v934
        %v936 = vmul.f32 %v852, %v852
        %v937 = vmul.f32 %v875, %v875
        %v938 = vadd.f32 %v936, %v937
        %939 = vadd.xlane.f32.xlu0 %v938
        %v940 = vpop.xlane.xlu0 %939
        %v941 = vrot.slane %v940, 4
        %v942 = vadd.f32 %v940, %v941
        %v943 = vrot.slane %v942, 2
        %v944 = vadd.f32 %v942, %v943
        %v945 = vrot.slane %v944, 1
        %v946 = vadd.f32 %v944, %v945
        %v947 = vmul.f32 %v935, 0.00048828125
        %v948 = vmul.f32 %v946, 0.00048828125
        %v949 = vmul.f32 %v947, %v947
        %v950 = vsub.f32 %v948, %v949
        %v951 = vadd.f32 %v950, 1e-05
        %v952 = vrsqrt.pop %v951
        %v953 = vmul.f32 %v952, %v951
        %v954 = vmul.f32 %v953, %v952
        %v955 = vmul.f32 0.5, %v954
        %v956 = vsub.f32 1.5, %v955
        %v957 = vmul.f32 %v952, %v956
        %vm958 = vweird.f32 %v951
        %vm959 = vweird.f32 %v952
        %vm960 = vmor %vm958, %vm959
        %v961 = vsel %vm960, %v952, %v957
        %v962 = vsub.f32 %v852, %v947
        %v963 = vsub.f32 %v875, %v947
        %v964 = vmul.f32 %v962, %v961
        %v965 = vmul.f32 %v963, %v961
        %v966 = vmul.f32 %v964, %v880
        %v967 = vmul.f32 %v965, %v881
        %v968 = vadd.f32 %v966, %v882
        %v969 = vadd.f32 %v967, %v883
        %v970 = vmax.f32 %v925, 0.0
        %v971 = vmax.f32 %v926, 0.0
        %v972 = vmax.f32 %v968, 0.0
        %v973 = vmax.f32 %v969, 0.0
        %v974 = vld [vmem:[#allocation13] sm:$0xff]
        %v975 = vld [vmem:[#allocation13 + $0x8] sm:$0xff]
        %v976 = vld [vmem:[#allocation14] sm:$0xff]
        %v977 = vld [vmem:[#allocation14 + $0x8] sm:$0xff]
        %v978 = vadd.f32 %v809, %v832
        %979 = vadd.xlane.f32.xlu0 %v978
        %v980 = vpop.xlane.xlu0 %979
        %v981 = vrot.slane %v980, 4
        %v982 = vadd.f32 %v980, %v981
        %v983 = vrot.slane %v982, 2
        %v984 = vadd.f32 %v982, %v983
        %v985 = vrot.slane %v984, 1
        %v986 = vadd.f32 %v984, %v985
        %v987 = vmul.f32 %v809, %v809
        %v988 = vmul.f32 %v832, %v832
        %v989 = vadd.f32 %v987, %v988
        %990 = vadd.xlane.f32.xlu0 %v989
        %v991 = vpop.xlane.xlu0 %990
        %v992 = vrot.slane %v991, 4
        %v993 = vadd.f32 %v991, %v992
        %v994 = vrot.slane %v993, 2
        %v995 = vadd.f32 %v993, %v994
        %v996 = vrot.slane %v995, 1
        %v997 = vadd.f32 %v995, %v996
        %v998 = vmul.f32 %v986, 0.00048828125
        %v999 = vmul.f32 %v997, 0.00048828125
        %v1000 = vmul.f32 %v998, %v998
        %v1001 = vsub.f32 %v999, %v1000
        %v1002 = vadd.f32 %v1001, 1e-05
        %v1003 = vrsqrt.pop %v1002
        %v1004 = vmul.f32 %v1003, %v1002
        %v1005 = vmul.f32 %v1004, %v1003
        %v1006 = vmul.f32 0.5, %v1005
        %v1007 = vsub.f32 1.5, %v1006
        %v1008 = vmul.f32 %v1003, %v1007
        %vm1009 = vweird.f32 %v1002
        %vm1010 = vweird.f32 %v1003
        %vm1011 = vmor %vm1009, %vm1010
        %v1012 = vsel %vm1011, %v1003, %v1008
        %v1013 = vsub.f32 %v809, %v998
        %v1014 = vsub.f32 %v832, %v998
        %v1015 = vmul.f32 %v1013, %v1012
        %v1016 = vmul.f32 %v1014, %v1012
        %v1017 = vmul.f32 %v1015, %v974
        %v1018 = vmul.f32 %v1016, %v975
        %v1019 = vadd.f32 %v1017, %v976
        %v1020 = vadd.f32 %v1018, %v977
        %v1021 = vadd.f32 %v855, %v878
        %1022 = vadd.xlane.f32.xlu0 %v1021
        %v1023 = vpop.xlane.xlu0 %1022
        %v1024 = vrot.slane %v1023, 4
        %v1025 = vadd.f32 %v1023, %v1024
        %v1026 = vrot.slane %v1025, 2
        %v1027 = vadd.f32 %v1025, %v1026
        %v1028 = vrot.slane %v1027, 1
        %v1029 = vadd.f32 %v1027, %v1028
        %v1030 = vmul.f32 %v855, %v855
        %v1031 = vmul.f32 %v878, %v878
        %v1032 = vadd.f32 %v1030, %v1031
        %1033 = vadd.xlane.f32.xlu0 %v1032
        %v1034 = vpop.xlane.xlu0 %1033
        %v1035 = vrot.slane %v1034, 4
        %v1036 = vadd.f32 %v1034, %v1035
        %v1037 = vrot.slane %v1036, 2
        %v1038 = vadd.f32 %v1036, %v1037
        %v1039 = vrot.slane %v1038, 1
        %v1040 = vadd.f32 %v1038, %v1039
        %v1041 = vmul.f32 %v1029, 0.00048828125
        %v1042 = vmul.f32 %v1040, 0.00048828125
        %v1043 = vmul.f32 %v1041, %v1041
        %v1044 = vsub.f32 %v1042, %v1043
        %v1045 = vadd.f32 %v1044, 1e-05
        %v1046 = vrsqrt.pop %v1045
        %v1047 = vmul.f32 %v1046, %v1045
        %v1048 = vmul.f32 %v1047, %v1046
        %v1049 = vmul.f32 0.5, %v1048
        %v1050 = vsub.f32 1.5, %v1049
        %v1051 = vmul.f32 %v1046, %v1050
        %vm1052 = vweird.f32 %v1045
        %vm1053 = vweird.f32 %v1046
        %vm1054 = vmor %vm1052, %vm1053
        %v1055 = vsel %vm1054, %v1046, %v1051
        %v1056 = vsub.f32 %v855, %v1041
        %v1057 = vsub.f32 %v878, %v1041
        %v1058 = vmul.f32 %v1056, %v1055
        %v1059 = vmul.f32 %v1057, %v1055
        %v1060 = vmul.f32 %v1058, %v974
        %v1061 = vmul.f32 %v1059, %v975
        %v1062 = vadd.f32 %v1060, %v976
        %v1063 = vadd.f32 %v1061, %v977
        %v1064 = vld [vmem:[#allocation10] sm:$0xff]
        %1065 = vrot.lane.b32.xlu0 %v970, 17
        %v1066 = vpop.permute.xlu0 %1065
        %1067 = vrot.lane.b32.xlu0 %v971, 17
        %v1068 = vpop.permute.xlu0 %1067
        %1069 = vrot.lane.b32.xlu0 %v972, 17
        %v1070 = vpop.permute.xlu0 %1069
        %1071 = vrot.lane.b32.xlu0 %v973, 17
        %v1072 = vpop.permute.xlu0 %1071
        %v1073 = vsel %vm554, %v1070, %v1072
        %v1074 = vsel %vm554, %v1068, %v1070
        %v1075 = vsel %vm554, %v1066, %v1068
        %v1076 = vsel %vm554, %v1072, %v1066
        %v1077 = vmul.f32 %v1076, %v561
        %v1078 = vmul.f32 %v1075, %v562
        %v1079 = vmul.f32 %v1074, %v563
        %v1080 = vmul.f32 %v1073, %v564
        %1081 = vrot.lane.b32.xlu0 %v970, 16
        %v1082 = vpop.permute.xlu0 %1081
        %1083 = vrot.lane.b32.xlu0 %v971, 16
        %v1084 = vpop.permute.xlu0 %1083
        %1085 = vrot.lane.b32.xlu0 %v972, 16
        %v1086 = vpop.permute.xlu0 %1085
        %1087 = vrot.lane.b32.xlu0 %v973, 16
        %v1088 = vpop.permute.xlu0 %1087
        %v1089 = vsel %vm581, %v1086, %v1088
        %v1090 = vsel %vm581, %v1084, %v1086
        %v1091 = vsel %vm581, %v1082, %v1084
        %v1092 = vsel %vm581, %v1088, %v1082
        %v1093 = vmul.f32 %v1092, %v589
        %v1094 = vmul.f32 %v1091, %v590
        %v1095 = vmul.f32 %v1090, %v591
        %v1096 = vmul.f32 %v1089, %v592
        %1097 = vrot.lane.b32.xlu0 %v970, 15
        %v1098 = vpop.permute.xlu0 %1097
        %1099 = vrot.lane.b32.xlu0 %v971, 15
        %v1100 = vpop.permute.xlu0 %1099
        %1101 = vrot.lane.b32.xlu0 %v972, 15
        %v1102 = vpop.permute.xlu0 %1101
        %1103 = vrot.lane.b32.xlu0 %v973, 15
        %v1104 = vpop.permute.xlu0 %1103
        %v1105 = vsel %vm609, %v1102, %v1104
        %v1106 = vsel %vm609, %v1100, %v1102
        %v1107 = vsel %vm609, %v1098, %v1100
        %v1108 = vsel %vm609, %v1104, %v1098
        %v1109 = vmul.f32 %v1108, %v617
        %v1110 = vmul.f32 %v1107, %v618
        %v1111 = vmul.f32 %v1106, %v619
        %v1112 = vmul.f32 %v1105, %v620
        %1113 = vrot.lane.b32.xlu0 %v970, 1
        %v1114 = vpop.permute.xlu0 %1113
        %1115 = vrot.lane.b32.xlu0 %v971, 1
        %v1116 = vpop.permute.xlu0 %1115
        %1117 = vrot.lane.b32.xlu0 %v972, 1
        %v1118 = vpop.permute.xlu0 %1117
        %1119 = vrot.lane.b32.xlu0 %v973, 1
        %v1120 = vpop.permute.xlu0 %1119
        %v1121 = vsel %vm637, %v1118, %v1120
        %v1122 = vsel %vm637, %v1116, %v1118
        %v1123 = vsel %vm637, %v1114, %v1116
        %v1124 = vsel %vm637, %v1120, %v1114
        %v1125 = vmul.f32 %v1124, %v645
        %v1126 = vmul.f32 %v1123, %v646
        %v1127 = vmul.f32 %v1122, %v647
        %v1128 = vmul.f32 %v1121, %v648
        %1129 = vrot.lane.b32.xlu0 %v970, 127
        %v1130 = vpop.permute.xlu0 %1129
        %1131 = vrot.lane.b32.xlu0 %v971, 127
        %v1132 = vpop.permute.xlu0 %1131
        %1133 = vrot.lane.b32.xlu0 %v972, 127
        %v1134 = vpop.permute.xlu0 %1133
        %1135 = vrot.lane.b32.xlu0 %v973, 127
        %v1136 = vpop.permute.xlu0 %1135
        %v1137 = vsel %vm665, %v1134, %v1136
        %v1138 = vsel %vm665, %v1132, %v1134
        %v1139 = vsel %vm665, %v1130, %v1132
        %v1140 = vsel %vm665, %v1136, %v1130
        %v1141 = vmul.f32 %v1139, %v673
        %v1142 = vmul.f32 %v1138, %v674
        %v1143 = vmul.f32 %v1137, %v675
        %v1144 = vmul.f32 %v1140, %v676
        %1145 = vrot.lane.b32.xlu0 %v970, 113
        %v1146 = vpop.permute.xlu0 %1145
        %1147 = vrot.lane.b32.xlu0 %v971, 113
        %v1148 = vpop.permute.xlu0 %1147
        %1149 = vrot.lane.b32.xlu0 %v972, 113
        %v1150 = vpop.permute.xlu0 %1149
        %1151 = vrot.lane.b32.xlu0 %v973, 113
        %v1152 = vpop.permute.xlu0 %1151
        %v1153 = vsel %vm693, %v1150, %v1152
        %v1154 = vsel %vm693, %v1148, %v1150
        %v1155 = vsel %vm693, %v1146, %v1148
        %v1156 = vsel %vm693, %v1152, %v1146
        %v1157 = vmul.f32 %v1155, %v701
        %v1158 = vmul.f32 %v1154, %v702
        %v1159 = vmul.f32 %v1153, %v703
        %v1160 = vmul.f32 %v1156, %v704
        %1161 = vrot.lane.b32.xlu0 %v970, 112
        %v1162 = vpop.permute.xlu0 %1161
        %1163 = vrot.lane.b32.xlu0 %v971, 112
        %v1164 = vpop.permute.xlu0 %1163
        %1165 = vrot.lane.b32.xlu0 %v972, 112
        %v1166 = vpop.permute.xlu0 %1165
        %1167 = vrot.lane.b32.xlu0 %v973, 112
        %v1168 = vpop.permute.xlu0 %1167
        %v1169 = vsel %vm721, %v1166, %v1168
        %v1170 = vsel %vm721, %v1164, %v1166
        %v1171 = vsel %vm721, %v1162, %v1164
        %v1172 = vsel %vm721, %v1168, %v1162
        %v1173 = vmul.f32 %v1171, %v729
        %v1174 = vmul.f32 %v1170, %v730
        %v1175 = vmul.f32 %v1169, %v731
        %v1176 = vmul.f32 %v1172, %v732
        %1177 = vrot.lane.b32.xlu0 %v970, 111
        %v1178 = vpop.permute.xlu0 %1177
        %1179 = vrot.lane.b32.xlu0 %v971, 111
        %v1180 = vpop.permute.xlu0 %1179
        %1181 = vrot.lane.b32.xlu0 %v972, 111
        %v1182 = vpop.permute.xlu0 %1181
        %1183 = vrot.lane.b32.xlu0 %v973, 111
        %v1184 = vpop.permute.xlu0 %1183
        %v1185 = vsel %vm749, %v1182, %v1184
        %v1186 = vsel %vm749, %v1180, %v1182
        %v1187 = vsel %vm749, %v1178, %v1180
        %v1188 = vsel %vm749, %v1184, %v1178
        %v1189 = vmul.f32 %v1187, %v757
        %v1190 = vmul.f32 %v1186, %v758
        %v1191 = vmul.f32 %v1185, %v759
        %v1192 = vmul.f32 %v1188, %v760
        %v1193 = vld [vmem:[%s7] sm:$0xff]
        %1195 = vset.pattern.permute.xlu0 0
        %1196 = vperm.xlu0 %1195, %v1193
        %v1197 = vpop.permute.xlu0 %1196
        %v1200 = vsel %vm781, %v1064, 0
        %1202 = vmatpush.msra.mxu0 0.0
        %1203 = vmatpush.msra.mxu0 0.0
        %1204 = vmatpush.msra.mxu0 0.0
        %1205 = vmatpush.msra.mxu0 0.0
        %1206 = vmatpush.msra.mxu0 0.0
        %1207 = vmatpush.msra.mxu0 0.0
        %1208 = vmatpush.msra.mxu0 0.0
        %1209 = vmatpush.msra.mxu0 %v1189
        %1210 = vmatpush.msra.mxu0 %v1173
        %1211 = vmatpush.msra.mxu0 %v1157
        %1212 = vmatpush.msra.mxu0 %v1141
        %1213 = vmatpush.msra.mxu0 %v970
        %1214 = vmatpush.msra.mxu0 %v1125
        %1215 = vmatpush.msra.mxu0 %v1109
        %1216 = vmatpush.msra.mxu0 %v1093
        %1217 = vmatpush.msra.mxu0 %v1077
        %1218 = vmatmul.f32.gmra.mxu0 %v1200
        %v1219 = vpop.f32.mrf.mxu0
        %v1220 = vadd.f32 %v1197, %v1219
        %1221 = vdwg.mxu0
        %1222 = vmatpush.msra.mxu0 0.0
        %1223 = vmatpush.msra.mxu0 0.0
        %1224 = vmatpush.msra.mxu0 0.0
        %1225 = vmatpush.msra.mxu0 0.0
        %1226 = vmatpush.msra.mxu0 0.0
        %1227 = vmatpush.msra.mxu0 0.0
        %1228 = vmatpush.msra.mxu0 0.0
        %1229 = vmatpush.msra.mxu0 %v1190
        %1230 = vmatpush.msra.mxu0 %v1174
        %1231 = vmatpush.msra.mxu0 %v1158
        %1232 = vmatpush.msra.mxu0 %v1142
        %1233 = vmatpush.msra.mxu0 %v971
        %1234 = vmatpush.msra.mxu0 %v1126
        %1235 = vmatpush.msra.mxu0 %v1110
        %1236 = vmatpush.msra.mxu0 %v1094
        %1237 = vmatpush.msra.mxu0 %v1078
        %1238 = vmatmul.f32.gmra.mxu0 %v1200
        %v1239 = vpop.f32.mrf.mxu0
        %v1240 = vadd.f32 %v1197, %v1239
        %1241 = vdwg.mxu0
        %1242 = vmatpush.msra.mxu0 0.0
        %1243 = vmatpush.msra.mxu0 0.0
        %1244 = vmatpush.msra.mxu0 0.0
        %1245 = vmatpush.msra.mxu0 0.0
        %1246 = vmatpush.msra.mxu0 0.0
        %1247 = vmatpush.msra.mxu0 0.0
        %1248 = vmatpush.msra.mxu0 0.0
        %1249 = vmatpush.msra.mxu0 %v1191
        %1250 = vmatpush.msra.mxu0 %v1175
        %1251 = vmatpush.msra.mxu0 %v1159
        %1252 = vmatpush.msra.mxu0 %v1143
        %1253 = vmatpush.msra.mxu0 %v972
        %1254 = vmatpush.msra.mxu0 %v1127
        %1255 = vmatpush.msra.mxu0 %v1111
        %1256 = vmatpush.msra.mxu0 %v1095
        %1257 = vmatpush.msra.mxu0 %v1079
        %1258 = vmatmul.f32.gmra.mxu0 %v1200
        %v1259 = vpop.f32.mrf.mxu0
        %v1260 = vadd.f32 %v1197, %v1259
        %1261 = vdwg.mxu0
        %1262 = vmatpush.msra.mxu0 0.0
        %1263 = vmatpush.msra.mxu0 0.0
        %1264 = vmatpush.msra.mxu0 0.0
        %1265 = vmatpush.msra.mxu0 0.0
        %1266 = vmatpush.msra.mxu0 0.0
        %1267 = vmatpush.msra.mxu0 0.0
        %1268 = vmatpush.msra.mxu0 0.0
        %1269 = vmatpush.msra.mxu0 %v1192
        %1270 = vmatpush.msra.mxu0 %v1176
        %1271 = vmatpush.msra.mxu0 %v1160
        %1272 = vmatpush.msra.mxu0 %v1144
        %1273 = vmatpush.msra.mxu0 %v973
        %1274 = vmatpush.msra.mxu0 %v1128
        %1275 = vmatpush.msra.mxu0 %v1112
        %1276 = vmatpush.msra.mxu0 %v1096
        %1277 = vmatpush.msra.mxu0 %v1080
        %1278 = vmatmul.f32.gmra.mxu0 %v1200
        %v1279 = vpop.f32.mrf.mxu0
        %v1280 = vadd.f32 %v1197, %v1279
        %1281 = vdwg.mxu0
        %v1282 = vld [vmem:[%s8] sm:$0xff]
        %v1283 = vld [vmem:[%s8 + $0x8] sm:$0xff]
        %v1284 = vld [vmem:[#allocation11] sm:$0xff]
        %v1285 = vld [vmem:[#allocation11 + $0x8] sm:$0xff]
        %v1286 = vadd.f32 %v1220, %v1240
        %1287 = vadd.xlane.f32.xlu0 %v1286
        %v1288 = vpop.xlane.xlu0 %1287
        %v1289 = vrot.slane %v1288, 4
        %v1290 = vadd.f32 %v1288, %v1289
        %v1291 = vrot.slane %v1290, 2
        %v1292 = vadd.f32 %v1290, %v1291
        %v1293 = vrot.slane %v1292, 1
        %v1294 = vadd.f32 %v1292, %v1293
        %v1295 = vmul.f32 %v1220, %v1220
        %v1296 = vmul.f32 %v1240, %v1240
        %v1297 = vadd.f32 %v1295, %v1296
        %1298 = vadd.xlane.f32.xlu0 %v1297
        %v1299 = vpop.xlane.xlu0 %1298
        %v1300 = vrot.slane %v1299, 4
        %v1301 = vadd.f32 %v1299, %v1300
        %v1302 = vrot.slane %v1301, 2
        %v1303 = vadd.f32 %v1301, %v1302
        %v1304 = vrot.slane %v1303, 1
        %v1305 = vadd.f32 %v1303, %v1304
        %v1306 = vmul.f32 %v1294, 0.00048828125
        %v1307 = vmul.f32 %v1305, 0.00048828125
        %v1308 = vmul.f32 %v1306, %v1306
        %v1309 = vsub.f32 %v1307, %v1308
        %v1310 = vadd.f32 %v1309, 1e-05
        %v1311 = vrsqrt.pop %v1310
        %v1312 = vmul.f32 %v1311, %v1310
        %v1313 = vmul.f32 %v1312, %v1311
        %v1314 = vmul.f32 0.5, %v1313
        %v1315 = vsub.f32 1.5, %v1314
        %v1316 = vmul.f32 %v1311, %v1315
        %vm1317 = vweird.f32 %v1310
        %vm1318 = vweird.f32 %v1311
        %vm1319 = vmor %vm1317, %vm1318
        %v1320 = vsel %vm1319, %v1311, %v1316
        %v1321 = vsub.f32 %v1220, %v1306
        %v1322 = vsub.f32 %v1240, %v1306
        %v1323 = vmul.f32 %v1321, %v1320
        %v1324 = vmul.f32 %v1322, %v1320
        %v1325 = vmul.f32 %v1323, %v1282
        %v1326 = vmul.f32 %v1324, %v1283
        %v1327 = vadd.f32 %v1325, %v1284
        %v1328 = vadd.f32 %v1326, %v1285
        %v1329 = vadd.f32 %v1260, %v1280
        %1330 = vadd.xlane.f32.xlu0 %v1329
        %v1331 = vpop.xlane.xlu0 %1330
        %v1332 = vrot.slane %v1331, 4
        %v1333 = vadd.f32 %v1331, %v1332
        %v1334 = vrot.slane %v1333, 2
        %v1335 = vadd.f32 %v1333, %v1334
        %v1336 = vrot.slane %v1335, 1
        %v1337 = vadd.f32 %v1335, %v1336
        %v1338 = vmul.f32 %v1260, %v1260
        %v1339 = vmul.f32 %v1280, %v1280
        %v1340 = vadd.f32 %v1338, %v1339
        %1341 = vadd.xlane.f32.xlu0 %v1340
        %v1342 = vpop.xlane.xlu0 %1341
        %v1343 = vrot.slane %v1342, 4
        %v1344 = vadd.f32 %v1342, %v1343
        %v1345 = vrot.slane %v1344, 2
        %v1346 = vadd.f32 %v1344, %v1345
        %v1347 = vrot.slane %v1346, 1
        %v1348 = vadd.f32 %v1346, %v1347
        %v1349 = vmul.f32 %v1337, 0.00048828125
        %v1350 = vmul.f32 %v1348, 0.00048828125
        %v1351 = vmul.f32 %v1349, %v1349
        %v1352 = vsub.f32 %v1350, %v1351
        %v1353 = vadd.f32 %v1352, 1e-05
        %v1354 = vrsqrt.pop %v1353
        %v1355 = vmul.f32 %v1354, %v1353
        %v1356 = vmul.f32 %v1355, %v1354
        %v1357 = vmul.f32 0.5, %v1356
        %v1358 = vsub.f32 1.5, %v1357
        %v1359 = vmul.f32 %v1354, %v1358
        %vm1360 = vweird.f32 %v1353
        %vm1361 = vweird.f32 %v1354
        %vm1362 = vmor %vm1360, %vm1361
        %v1363 = vsel %vm1362, %v1354, %v1359
        %v1364 = vsub.f32 %v1260, %v1349
        %v1365 = vsub.f32 %v1280, %v1349
        %v1366 = vmul.f32 %v1364, %v1363
        %v1367 = vmul.f32 %v1365, %v1363
        %v1368 = vmul.f32 %v1366, %v1282
        %v1369 = vmul.f32 %v1367, %v1283
        %v1370 = vadd.f32 %v1368, %v1284
        %v1371 = vadd.f32 %v1369, %v1285
        %v1372 = vmax.f32 %v1327, 0.0
        %v1373 = vmax.f32 %v1328, 0.0
        %v1374 = vmax.f32 %v1370, 0.0
        %v1375 = vmax.f32 %v1371, 0.0
        %v1376 = vadd.f32 %v1372, %v1019
        %v1377 = vadd.f32 %v1373, %v1020
        %v1378 = vadd.f32 %v1374, %v1062
        %v1379 = vadd.f32 %v1375, %v1063
        %1380 = vst [vmem:[%s535] sm:$0xff] %v1376
        %1381 = vst [vmem:[%s535 + $0x8] sm:$0xff] %v1377
        %1382 = vst [vmem:[%s535 + $0x10] sm:$0xff] %v1378
        %1383 = vst [vmem:[%s535 + $0x18] sm:$0xff] %v1379
        %s1384 = sand.u32 %s298, 1
        %s1385 = scalar_lea.sflag [#allocation4], %s1384
        %s1386 = sand.u32 %s298, 1
        %s1387 = smul.addr %s1386, 32
        %s1388 = scalar_lea.vmem [#allocation16], %s1387
        // Predicated region
        $region101: #{tpu_custom_call.1} parent=67 // pred_check
          %p1389 = pneg %p308
        $region102: #{tpu_custom_call.1} parent=67 // pred_check_branch
          %1391 = sbr.rel (%p1389) target = $region104
        $region103: #{tpu_custom_call.1} parent=67 // pred_region
          %s1392 = smul.u32 4, %s33
          %1394 = vsyncadd %s1385, 0
          %s1395 = smul.addr %s1392, 8
          %s1396 = scalar_lea.hbm %s12, %s1395
          %s1398 = sshll.u32 %s1388, 4
          %s1399 = int_to_ptr.vmem [resolvable:$true] %s1398
          %s1400 = sshll.u32 %s1396, 4
          %s1401 = int_to_ptr.hbm [resolvable:$true] %s1400
          %1403 = dma.vmem_to_hbm [thread:$0]  %s1399, 512, %s1401, %s1385
        $region104: #{tpu_custom_call.1} parent=67 // pred_fallthru
          _
      $region68: #{tpu_custom_call.1} parent=5 // pred_fallthru
        _
      %p1404 = scmp.le.s32.totalorder 2, %s28
      // Predicated region
      $region105: #{tpu_custom_call.1} parent=5 // pred_check
        %p1405 = pneg %p1404
      $region106: #{tpu_custom_call.1} parent=5 // pred_check_branch
        %1407 = sbr.rel (%p1405) target = $region108
      $region107: #{tpu_custom_call.1} parent=5 // pred_region
        %s1408 = ssub.s32 %s28, 2
        // Predicated region
        $region109: #{tpu_custom_call.1} parent=107 // pred_check
          %p1409 = pneg %p314
        $region110: #{tpu_custom_call.1} parent=107 // pred_check_branch
          %1411 = sbr.rel (%p1409) target = $region112
        $region111: #{tpu_custom_call.1} parent=107 // pred_region
          %s1412 = sand.u32 %s299, 1
          %s1413 = scalar_lea.sflag [#allocation4], %s1412
          %s1414 = sand.u32 %s299, 1
          %s1415 = smul.addr %s1414, 32
          %s1416 = scalar_lea.vmem [#allocation16], %s1415
          %1418 = dma.done %s1413, 512
        $region112: #{tpu_custom_call.1} parent=107 // pred_fallthru
          _
      $region108: #{tpu_custom_call.1} parent=5 // pred_fallthru
        _
    $region6: #{tpu_custom_call.1} parent=1 // loop_footer
      %s32 = sadd.s32 1, %s28
    $region7: #{tpu_custom_call.1} parent=1 // loop_footer_branch
      %27 = sbr.rel target = $region3
    $region8: #{tpu_custom_call.1} parent=1 // loop_exit
      _
    %1419 = vsyncpa [#allocation3], 1
    %s1420 = scalar_lea.sflag [#allocation3], 1
    %1421 = vsyncpa %s1420, 1
    %1422 = vsyncpa [#allocation6], 1
    %1423 = vsyncpa [#allocation9], 1
    %1424 = vsyncpa [#allocation12], 1
    %1425 = vsyncpa [#allocation15], 1
    %1426 = vsyncpa [#allocation4], 1
    %s1427 = scalar_lea.sflag [#allocation4], 1
    %1428 = vsyncpa %s1427, 1

</llo_original>
